<compile_context>
chip_gen: v6e
topology: v6e:2x2x1
jax: 0.10.0
libtpu: 0.0.40
codegen_flags: <defaults>
</compile_context>

<pallas_src>
import functools

import jax
import jax.numpy as jnp
from jax.experimental import pallas as pl
from jax.experimental.pallas import tpu as pltpu


def _vmem_limit_bytes():
    """Generation-aware scoped-VMEM budget (v7x: 64 MiB, v5e/v6e: 128 MiB)."""
    cap = 64 * 1024 * 1024                      # conservative fallback (v7x-safe)
    try:
        cap = int(pltpu.get_tpu_info().vmem_capacity_bytes)
    except Exception:
        pass
    # Leave ~16 MiB headroom for Mosaic internal scratch; cap at 100 MiB.
    return int(min(max(cap - 16 * 1024 * 1024, 32 * 1024 * 1024),
                   100 * 1024 * 1024))


def _pick_tile(n, vmem_budget):
    cands = (1024, 512, 256, 128) if vmem_budget >= (80 << 20) else (512, 256, 128)
    for t in cands:
        if n % t == 0:
            return t
    return n


# ----------------------------- Pallas kernels ------------------------------

def _prep_kernel(x_cn_ref, x_nc_ref, w_qkv_ref, qkv_ref, pcam_ref, energy_acc):
    """Fused QKV 1x1-conv projection + CAM channel-attention matrix.

    Grid: (batch, N-tile).  The CAM (c, c) energy is accumulated over N tiles
    in an f32 scratch; all matmuls use bf16 MXU operands with f32 accumulation.
    """
    kt = pl.program_id(1)

    x_cn = x_cn_ref[0]                                    # (c, T)  f32
    x_cn_b = x_cn.astype(jnp.bfloat16)
    x_nc_b = x_nc_ref[0].astype(jnp.bfloat16)             # (T, c)  bf16

    # conv1/conv2/conv3 fused into one (3*c2, c) @ (c, T) bf16 MXU matmul
    # (weights pre-cast to bf16 in the wrapper).
    qkv = jnp.dot(w_qkv_ref[...], x_cn_b, preferred_element_type=jnp.float32)
    qkv_ref[0] = qkv.astype(jnp.bfloat16)

    @pl.when(kt == 0)
    def _():
        energy_acc[...] = jnp.zeros_like(energy_acc)

    # CAM energy: energy = x_cn @ x_nc summed over all N tiles
    # (bf16 MXU operands, f32 accumulation in scratch).
    energy_acc[...] += jnp.dot(x_cn_b, x_nc_b, preferred_element_type=jnp.float32)

    @pl.when(kt == pl.num_programs(1) - 1)
    def _():
        e = energy_acc[...]
        e = e - jnp.max(e, axis=-1, keepdims=True)
        p = jnp.exp(e)
        # Exact divide: the (c, c) softmax is tiny and exp-precision-sensitive.
        pcam_ref[0] = (p / jnp.sum(p, axis=-1, keepdims=True)).astype(pcam_ref.dtype)


def _pam_attn_kernel(q_ref, k_ref, v_ref, o_ref, m_sc, l_sc, acc_sc):
    """Flash-style PAM attention: online softmax over KV tiles.

    Grid: (batch, Q-tile, KV-tile); the KV axis is "arbitrary" with m/l/acc
    scratch, so live temporaries are capped at (Tq, Tk) f32.
    """
    ki = pl.program_id(2)

    @pl.when(ki == 0)
    def _():
        m_sc[...] = jnp.full(m_sc.shape, -jnp.inf, m_sc.dtype)
        l_sc[...] = jnp.zeros_like(l_sc)
        acc_sc[...] = jnp.zeros_like(acc_sc)

    q = q_ref[0, 0]                                       # (Tq, c2)  bf16
    k = k_ref[0, 0]                                       # (c2, Tk)  bf16
    v = v_ref[0, 0]                                       # (Tk, c2)  bf16

    s = jnp.dot(q, k, preferred_element_type=jnp.float32)           # (Tq, Tk)
    m_new = jnp.maximum(m_sc[...], jnp.max(s, axis=-1, keepdims=True))
    alpha = jnp.exp(m_sc[...] - m_new)
    p = jnp.exp(s - m_new)
    l_sc[...] = alpha * l_sc[...] + jnp.sum(p, axis=-1, keepdims=True)
    acc_sc[...] = alpha * acc_sc[...] + jnp.dot(
        p.astype(jnp.bfloat16), v, preferred_element_type=jnp.float32)
    m_sc[...] = m_new

    @pl.when(ki == pl.num_programs(2) - 1)
    def _():
        o_ref[0] = (acc_sc[...] *
                    pl.reciprocal(l_sc[...], approx=True)).astype(o_ref.dtype)


def _out_kernel(res_ref, x_ref, pcam_ref, w4_ref, wcam_ref, shift_ref, o_ref):
    """conv4 (PAM) + CAM apply + conv1 (CAM) + both BN shifts + residuals.

    BN scales are pre-folded into w4/w_cam (bf16) in the wrapper; the two BN
    shifts are combined into a single (c, 1) add.
    """
    res = res_ref[0]                                      # (c2, T)  bf16
    x = x_ref[0]                                          # (c, T)   f32
    x_b = x.astype(jnp.bfloat16)

    # CAM branch (bf16 MXU operands, f32 accumulation).
    r = jnp.dot(pcam_ref[0], x_b, preferred_element_type=jnp.float32)     # (c, T)
    cam = jnp.dot(wcam_ref[...], r.astype(jnp.bfloat16),
                  preferred_element_type=jnp.float32)

    # PAM branch: conv4 (BN scale folded into the weight) on attention result.
    pam = jnp.dot(w4_ref[...], res, preferred_element_type=jnp.float32)   # (c, T)

    # output = (pam + shift_pam + x) + (cam + shift_cam + x)
    o_ref[0] = pam + cam + 2.0 * x + shift_ref[...]


# ------------------------------ JAX wrapper --------------------------------

def non_local_forward(x, params, *, tile_n=None):
    b, c, h, w = x.shape
    n = h * w
    c2 = c // 2
    f32 = jnp.float32
    bf16 = jnp.bfloat16

    vmem_limit = _vmem_limit_bytes()
    t = tile_n if (tile_n is not None and n % tile_n == 0) else _pick_tile(n, vmem_limit)
    nt = n // t

    x_cn = x.reshape(b, c, n)      # inputs.view(b, c, -1)   (bitcast)
    x_nc = x.reshape(b, n, c)      # inputs.view(b, -1, c)   (bitcast)

    # conv1/conv2/conv3 weights concatenated and pre-cast to bf16 once
    # (loop-invariant; avoids a per-tile VPU cast inside the kernel).
    w_qkv = jnp.concatenate([params['w1'], params['w2'], params['w3']],
                            axis=0).astype(bf16)

    # ---- kernel 1: QKV projection + CAM channel-attention matrix ----
    qkv, p_cam = pl.pallas_call(
        _prep_kernel,
        out_shape=(jax.ShapeDtypeStruct((b, 3 * c2, n), bf16),
                   jax.ShapeDtypeStruct((b, c, c), bf16)),
        grid=(b, nt),
        in_specs=[pl.BlockSpec((1, c, t), lambda i, k: (i, 0, k)),
                  pl.BlockSpec((1, t, c), lambda i, k: (i, k, 0)),
                  pl.BlockSpec((3 * c2, c), lambda i, k: (0, 0))],
        out_specs=(pl.BlockSpec((1, 3 * c2, t), lambda i, k: (i, 0, k)),
                   pl.BlockSpec((1, c, c), lambda i, k: (i, 0, 0))),
        scratch_shapes=[pltpu.VMEM((c, c), f32)],
        compiler_params=pltpu.CompilerParams(
            dimension_semantics=("parallel", "arbitrary"),
            vmem_limit_bytes=vmem_limit),
    )(x_cn, x_nc, w_qkv)

    # Raw-view reinterpretations of q and v (free bitcast reshapes on HBM):
    #   qkv_nc[:, 0] == q.view(b, -1, c2), qkv_nc[:, 2] == v.view(b, -1, c2),
    #   qkv_cn[:, 1] == k.view(b, c2, -1).
    qkv_nc = qkv.reshape(b, 3, n, c2)
    qkv_cn = qkv.reshape(b, 3, c2, n)

    # ---- kernel 2: PAM spatial attention, flash-tiled over Q and KV ----
    res_nc = pl.pallas_call(
        _pam_attn_kernel,
        out_shape=jax.ShapeDtypeStruct((b, n, c2), bf16),
        grid=(b, nt, nt),
        in_specs=[pl.BlockSpec((1, 1, t, c2), lambda i, qi, ki: (i, 0, qi, 0)),  # q
                  pl.BlockSpec((1, 1, c2, t), lambda i, qi, ki: (i, 1, 0, ki)),  # k
                  pl.BlockSpec((1, 1, t, c2), lambda i, qi, ki: (i, 2, ki, 0))], # v
        out_specs=pl.BlockSpec((1, t, c2), lambda i, qi, ki: (i, qi, 0)),
        scratch_shapes=[pltpu.VMEM((t, 1), f32),     # running max
                        pltpu.VMEM((t, 1), f32),     # running denom
                        pltpu.VMEM((t, c2), f32)],   # running numerator
        compiler_params=pltpu.CompilerParams(
            dimension_semantics=("parallel", "parallel", "arbitrary"),
            vmem_limit_bytes=vmem_limit),
    )(qkv_nc, qkv_cn, qkv_nc)

    # torch `res.view(b, c2, h, w)` raw reinterpretation (bitcast).
    res_cn = res_nc.reshape(b, c2, n)

    # Fold BN scales into the conv weights (bf16); combine both BN shifts.
    w4_bn = (params['pam_scale'] * params['w4']).astype(bf16)
    wcam_bn = (params['cam_scale'] * params['w_cam']).astype(bf16)
    shift = params['pam_shift'] + params['cam_shift']

    # ---- kernel 3: conv4 (PAM) + CAM apply/conv1 + shifts + residuals ----
    out_cn = pl.pallas_call(
        _out_kernel,
        out_shape=jax.ShapeDtypeStruct((b, c, n), f32),
        grid=(b, nt),
        in_specs=[pl.BlockSpec((1, c2, t), lambda i, j: (i, 0, j)),
                  pl.BlockSpec((1, c, t), lambda i, j: (i, 0, j)),
                  pl.BlockSpec((1, c, c), lambda i, j: (i, 0, 0)),
                  pl.BlockSpec((c, c2), lambda i, j: (0, 0)),
                  pl.BlockSpec((c, c), lambda i, j: (0, 0)),
                  pl.BlockSpec((c, 1), lambda i, j: (0, 0))],
        out_specs=pl.BlockSpec((1, c, t), lambda i, j: (i, 0, j)),
        compiler_params=pltpu.CompilerParams(
            dimension_semantics=("parallel", "parallel"),
            vmem_limit_bytes=vmem_limit),
    )(res_cn, x_cn, p_cam, w4_bn, wcam_bn, shift)

    return out_cn.reshape(b, c, h, w)


# --------------------------- reference (pure JAX) ---------------------------

def ref_forward(x, params):
    b, c, h, w = x.shape
    n = h * w
    c2 = c // 2
    x_cn = x.reshape(b, c, n)
    x_nc = x.reshape(b, n, c)
    # CAM
    a = jnp.einsum('bcn,bnd->bcd', x_cn, x_nc)
    p = jax.nn.softmax(a, axis=-1)
    r = jnp.einsum('bcd,bdn->bcn', p, x_cn)
    cam = jnp.einsum('oc,bcn->bon', params['w_cam'], r)
    cam = cam * params['cam_scale'][None] + params['cam_shift'][None] + x_cn
    # PAM
    q = jnp.einsum('oc,bcn->bon', params['w1'], x_cn)
    k = jnp.einsum('oc,bcn->bon', params['w2'], x_cn)
    v = jnp.einsum('oc,bcn->bon', params['w3'], x_cn)
    q_nc = q.reshape(b, n, c2)
    v_nc = v.reshape(b, n, c2)
    s = jnp.einsum('bnc,bcm->bnm', q_nc, k)
    ps = jax.nn.softmax(s, axis=-1)
    res = jnp.einsum('bnm,bmc->bnc', ps, v_nc).reshape(b, c2, n)
    pam = jnp.einsum('oc,bcn->bon', params['w4'], res)
    pam = pam * params['pam_scale'][None] + params['pam_shift'][None] + x_cn
    return (pam + cam).reshape(b, c, h, w)


# ------------------------------ parameter init -----------------------------

def init_params(key, c, eps=1e-5):
    c2 = c // 2
    ks = jax.random.split(key, 12)

    def bn(scale_key, shift_key):
        gamma = 1.0 + 0.1 * jax.random.normal(scale_key, (c, 1), jnp.float32)
        beta = 0.1 * jax.random.normal(shift_key, (c, 1), jnp.float32)
        mean = jnp.zeros((c, 1), jnp.float32)
        var = jnp.ones((c, 1), jnp.float32)
        scale = gamma / jnp.sqrt(var + eps)
        shift = beta - mean * scale
        return scale, shift

    cam_scale, cam_shift = bn(ks[0], ks[1])
    pam_scale, pam_shift = bn(ks[2], ks[3])
    return {
        'w_cam': 0.2 * jax.random.normal(ks[4], (c, c), jnp.float32),
        'w1': 0.2 * jax.random.normal(ks[5], (c2, c), jnp.float32),
        'w2': 0.2 * jax.random.normal(ks[6], (c2, c), jnp.float32),
        'w3': 0.2 * jax.random.normal(ks[7], (c2, c), jnp.float32),
        'w4': 0.2 * jax.random.normal(ks[8], (c, c2), jnp.float32),
        'cam_scale': cam_scale, 'cam_shift': cam_shift,
        'pam_scale': pam_scale, 'pam_shift': pam_shift,
    }


# ---------------------------------- main ------------------------------------

if __name__ == "__main__":
    key = jax.random.PRNGKey(0)
    kx, kp = jax.random.split(key)

    b, c, h, w = 2, 4, 16, 16
    x = jax.random.normal(kx, (b, c, h, w), jnp.float32)
    params = init_params(kp, c)

    # tile_n=128 with N=256 exercises the multi-tile paths (CAM accumulation
    # across N tiles, flash online-softmax across 2 KV tiles per query tile).
    fwd = jax.jit(functools.partial(non_local_forward, tile_n=128))
    out = jax.block_until_ready(fwd(x, params))

    ref = ref_forward(x, params)
    assert out.shape == (b, c, h, w)
    # All large matmuls (QKV, CAM energy/apply, attention, conv4) use bf16 MXU
    # operands with f32 accumulation, so the comparison against the f32
    # reference uses a relaxed tolerance.
    assert jnp.allclose(out, ref, rtol=3e-2, atol=3e-2), "mismatch vs JAX reference"

    print("KERNEL_OK")
</pallas_src>

<mosaic_0001>
module attributes {stable_mosaic.version = 11 : i64} {
  func.func @_pam_attn_kernel(%arg0: i32, %arg1: i32, %arg2: i32, %arg3: memref<1x1x128x2xbf16, #tpu.memory_space<vmem>>, %arg4: memref<1x1x2x128xbf16, #tpu.memory_space<vmem>>, %arg5: memref<1x1x128x2xbf16, #tpu.memory_space<vmem>>, %arg6: memref<1x128x2xbf16, #tpu.memory_space<vmem>>, %arg7: memref<128x1xf32, #tpu.memory_space<vmem>>, %arg8: memref<128x1xf32, #tpu.memory_space<vmem>>, %arg9: memref<128x2xf32, #tpu.memory_space<vmem>>) attributes {dimension_semantics = [#tpu.dimension_semantics<parallel>, #tpu.dimension_semantics<parallel>, #tpu.dimension_semantics<arbitrary>], iteration_bounds = array<i64: 2, 2, 2>, scalar_prefetch = 0 : i64, scratch_operands = 3 : i64, tpu.core_type = #tpu.core_type<tc>, window_params = [{transform_indices = @transform_0, window_bounds = array<i64: 1, 1, 128, 2>}, {transform_indices = @transform_1, window_bounds = array<i64: 1, 1, 2, 128>}, {transform_indices = @transform_2, window_bounds = array<i64: 1, 1, 128, 2>}, {transform_indices = @transform_3, window_bounds = array<i64: 1, 128, 2>}]} {
    %c0_i32 = arith.constant 0 : i32
    %0 = arith.cmpi eq, %arg2, %c0_i32 : i32
    %1 = arith.extui %0 : i1 to i32
    %c0_i32_0 = arith.constant 0 : i32
    %2 = arith.cmpi ne, %1, %c0_i32_0 : i32
    scf.if %2 {
      %cst_30 = arith.constant 0xFF800000 : f32
      %37 = vector.broadcast %cst_30 : f32 to vector<128x1xf32>
      %c0_31 = arith.constant 0 : index
      %c0_32 = arith.constant 0 : index
      %38 = vector.load %arg7[%c0_31, %c0_32] : memref<128x1xf32, #tpu.memory_space<vmem>>, vector<128x1xf32>
      tpu.vector_store %arg7[%c0_31, %c0_32], %37 {strides = array<i32>} : memref<128x1xf32, #tpu.memory_space<vmem>>, vector<128x1xf32>,
      %cst_33 = arith.constant 0.000000e+00 : f32
      %39 = vector.broadcast %cst_33 : f32 to vector<128x1xf32>
      %c0_34 = arith.constant 0 : index
      %c0_35 = arith.constant 0 : index
      %40 = vector.load %arg8[%c0_34, %c0_35] : memref<128x1xf32, #tpu.memory_space<vmem>>, vector<128x1xf32>
      tpu.vector_store %arg8[%c0_34, %c0_35], %39 {strides = array<i32>} : memref<128x1xf32, #tpu.memory_space<vmem>>, vector<128x1xf32>,
      %cst_36 = arith.constant 0.000000e+00 : f32
      %41 = vector.broadcast %cst_36 : f32 to vector<128x2xf32>
      %c0_37 = arith.constant 0 : index
      %c0_38 = arith.constant 0 : index
      %42 = vector.load %arg9[%c0_37, %c0_38] : memref<128x2xf32, #tpu.memory_space<vmem>>, vector<128x2xf32>
      tpu.vector_store %arg9[%c0_37, %c0_38], %41 {strides = array<i32>} : memref<128x2xf32, #tpu.memory_space<vmem>>, vector<128x2xf32>,
    } else {
    }
    %c0 = arith.constant 0 : index
    %c0_1 = arith.constant 0 : index
    %c0_2 = arith.constant 0 : index
    %c0_3 = arith.constant 0 : index
    %3 = vector.load %arg3[%c0, %c0_1, %c0_2, %c0_3] : memref<1x1x128x2xbf16, #tpu.memory_space<vmem>>, vector<1x1x128x2xbf16>
    %4 = vector.shape_cast %3 : vector<1x1x128x2xbf16> to vector<128x2xbf16>
    %c0_4 = arith.constant 0 : index
    %c0_5 = arith.constant 0 : index
    %c0_6 = arith.constant 0 : index
    %c0_7 = arith.constant 0 : index
    %5 = vector.load %arg4[%c0_4, %c0_5, %c0_6, %c0_7] : memref<1x1x2x128xbf16, #tpu.memory_space<vmem>>, vector<1x1x2x128xbf16>
    %6 = vector.shape_cast %5 : vector<1x1x2x128xbf16> to vector<2x128xbf16>
    %c0_8 = arith.constant 0 : index
    %c0_9 = arith.constant 0 : index
    %c0_10 = arith.constant 0 : index
    %c0_11 = arith.constant 0 : index
    %7 = vector.load %arg5[%c0_8, %c0_9, %c0_10, %c0_11] : memref<1x1x128x2xbf16, #tpu.memory_space<vmem>>, vector<1x1x128x2xbf16>
    %8 = vector.shape_cast %7 : vector<1x1x128x2xbf16> to vector<128x2xbf16>
    %cst = arith.constant dense<0.000000e+00> : vector<128x128xf32>
    %9 = tpu.matmul %4, %6, %cst {dimension_numbers = #tpu.dot_dimension_numbers<[1], [0], [0], [1], [0, 0, 1, 1], [], []>} : vector<128x2xbf16>, vector<2x128xbf16>, vector<128x128xf32> -> vector<128x128xf32>
    %c0_12 = arith.constant 0 : index
    %c0_13 = arith.constant 0 : index
    %10 = vector.load %arg7[%c0_12, %c0_13] : memref<128x1xf32, #tpu.memory_space<vmem>>, vector<128x1xf32>
    %cst_14 = arith.constant dense<0xFF800000> : vector<128xf32>
    %11 = vector.multi_reduction <maximumf>, %9, %cst_14 [1] : vector<128x128xf32> to vector<128xf32>
    %12 = vector.shape_cast %11 : vector<128xf32> to vector<128x1xf32>
    %13 = arith.maximumf %10, %12 : vector<128x1xf32>
    %c0_15 = arith.constant 0 : index
    %c0_16 = arith.constant 0 : index
    %14 = vector.load %arg7[%c0_15, %c0_16] : memref<128x1xf32, #tpu.memory_space<vmem>>, vector<128x1xf32>
    %15 = arith.subf %14, %13 : vector<128x1xf32>
    %16 = math.exp %15 : vector<128x1xf32>
    %17 = vector.broadcast %13 : vector<128x1xf32> to vector<128x128xf32>
    %18 = arith.subf %9, %17 : vector<128x128xf32>
    %19 = math.exp %18 : vector<128x128xf32>
    %c0_17 = arith.constant 0 : index
    %c0_18 = arith.constant 0 : index
    %20 = vector.load %arg8[%c0_17, %c0_18] : memref<128x1xf32, #tpu.memory_space<vmem>>, vector<128x1xf32>
    %21 = arith.mulf %16, %20 : vector<128x1xf32>
    %cst_19 = arith.constant dense<0.000000e+00> : vector<128xf32>
    %22 = vector.multi_reduction <add>, %19, %cst_19 [1] : vector<128x128xf32> to vector<128xf32>
    %23 = vector.shape_cast %22 : vector<128xf32> to vector<128x1xf32>
    %24 = arith.addf %21, %23 : vector<128x1xf32>
    %c0_20 = arith.constant 0 : index
    %c0_21 = arith.constant 0 : index
    %25 = vector.load %arg8[%c0_20, %c0_21] : memref<128x1xf32, #tpu.memory_space<vmem>>, vector<128x1xf32>
    tpu.vector_store %arg8[%c0_20, %c0_21], %24 {strides = array<i32>} : memref<128x1xf32, #tpu.memory_space<vmem>>, vector<128x1xf32>,
    %c0_22 = arith.constant 0 : index
    %c0_23 = arith.constant 0 : index
    %26 = vector.load %arg9[%c0_22, %c0_23] : memref<128x2xf32, #tpu.memory_space<vmem>>, vector<128x2xf32>
    %27 = vector.broadcast %16 : vector<128x1xf32> to vector<128x2xf32>
    %28 = arith.mulf %27, %26 : vector<128x2xf32>
    %29 = arith.truncf %19 : vector<128x128xf32> to vector<128x128xbf16>
    %cst_24 = arith.constant dense<0.000000e+00> : vector<128x2xf32>
    %30 = tpu.matmul %29, %8, %cst_24 {dimension_numbers = #tpu.dot_dimension_numbers<[1], [0], [0], [1], [0, 0, 1, 1], [], []>} : vector<128x128xbf16>, vector<128x2xbf16>, vector<128x2xf32> -> vector<128x2xf32>
    %31 = arith.addf %28, %30 : vector<128x2xf32>
    %c0_25 = arith.constant 0 : index
    %c0_26 = arith.constant 0 : index
    %32 = vector.load %arg9[%c0_25, %c0_26] : memref<128x2xf32, #tpu.memory_space<vmem>>, vector<128x2xf32>
    tpu.vector_store %arg9[%c0_25, %c0_26], %31 {strides = array<i32>} : memref<128x2xf32, #tpu.memory_space<vmem>>, vector<128x2xf32>,
    %c0_27 = arith.constant 0 : index
    %c0_28 = arith.constant 0 : index
    %33 = vector.load %arg7[%c0_27, %c0_28] : memref<128x1xf32, #tpu.memory_space<vmem>>, vector<128x1xf32>
    tpu.vector_store %arg7[%c0_27, %c0_28], %13 {strides = array<i32>} : memref<128x1xf32, #tpu.memory_space<vmem>>, vector<128x1xf32>,
    %c1_i32 = arith.constant 1 : i32
    %34 = arith.cmpi eq, %arg2, %c1_i32 : i32
    %35 = arith.extui %34 : i1 to i32
    %c0_i32_29 = arith.constant 0 : i32
    %36 = arith.cmpi ne, %35, %c0_i32_29 : i32
    scf.if %36 {
      %c0_30 = arith.constant 0 : index
      %c0_31 = arith.constant 0 : index
      %37 = vector.load %arg9[%c0_30, %c0_31] : memref<128x2xf32, #tpu.memory_space<vmem>>, vector<128x2xf32>
      %c0_32 = arith.constant 0 : index
      %c0_33 = arith.constant 0 : index
      %38 = vector.load %arg8[%c0_32, %c0_33] : memref<128x1xf32, #tpu.memory_space<vmem>>, vector<128x1xf32>
      %39 = tpu.reciprocal %38 {approx = true} : vector<128x1xf32> -> vector<128x1xf32>
      %40 = vector.broadcast %39 : vector<128x1xf32> to vector<128x2xf32>
      %41 = arith.mulf %37, %40 : vector<128x2xf32>
      %42 = arith.truncf %41 : vector<128x2xf32> to vector<128x2xbf16>
      %c0_34 = arith.constant 0 : index
      %c0_35 = arith.constant 0 : index
      %c0_36 = arith.constant 0 : index
      %43 = vector.load %arg6[%c0_34, %c0_35, %c0_36] : memref<1x128x2xbf16, #tpu.memory_space<vmem>>, vector<1x128x2xbf16>
      %44 = vector.shape_cast %43 : vector<1x128x2xbf16> to vector<128x2xbf16>
      %45 = vector.shape_cast %42 : vector<128x2xbf16> to vector<1x128x2xbf16>
      tpu.vector_store %arg6[%c0_34, %c0_35, %c0_36], %45 {strides = array<i32>} : memref<1x128x2xbf16, #tpu.memory_space<vmem>>, vector<1x128x2xbf16>,
    } else {
    }
    return
  }
  func.func @transform_0(%arg0: i32, %arg1: i32, %arg2: i32) -> (i32, i32, i32, i32) {
    %c0_i32 = arith.constant 0 : i32
    %c0_i32_0 = arith.constant 0 : i32
    %c0_i32_1 = arith.constant 0 : i32
    return %arg0, %c0_i32, %arg1, %c0_i32_0 : i32, i32, i32, i32
  }
  func.func @transform_1(%arg0: i32, %arg1: i32, %arg2: i32) -> (i32, i32, i32, i32) {
    %c1_i32 = arith.constant 1 : i32
    %c0_i32 = arith.constant 0 : i32
    %c0_i32_0 = arith.constant 0 : i32
    return %arg0, %c1_i32, %c0_i32, %arg2 : i32, i32, i32, i32
  }
  func.func @transform_2(%arg0: i32, %arg1: i32, %arg2: i32) -> (i32, i32, i32, i32) {
    %c2_i32 = arith.constant 2 : i32
    %c0_i32 = arith.constant 0 : i32
    %c0_i32_0 = arith.constant 0 : i32
    return %arg0, %c2_i32, %arg2, %c0_i32 : i32, i32, i32, i32
  }
  func.func @transform_3(%arg0: i32, %arg1: i32, %arg2: i32) -> (i32, i32, i32) {
    %c0_i32 = arith.constant 0 : i32
    %c0_i32_0 = arith.constant 0 : i32
    return %arg0, %arg1, %c0_i32 : i32, i32, i32
  }
}

module attributes {stable_mosaic.version = 11 : i64} {
  func.func @_prep_kernel(%arg0: i32, %arg1: i32, %arg2: memref<1x4x128xf32, #tpu.memory_space<vmem>>, %arg3: memref<1x128x4xf32, #tpu.memory_space<vmem>>, %arg4: memref<6x4xbf16, #tpu.memory_space<vmem>>, %arg5: memref<1x6x128xbf16, #tpu.memory_space<vmem>>, %arg6: memref<1x4x4xbf16, #tpu.memory_space<vmem>>, %arg7: memref<4x4xf32, #tpu.memory_space<vmem>>) attributes {dimension_semantics = [#tpu.dimension_semantics<parallel>, #tpu.dimension_semantics<arbitrary>], iteration_bounds = array<i64: 2, 2>, scalar_prefetch = 0 : i64, scratch_operands = 1 : i64, tpu.core_type = #tpu.core_type<tc>, window_params = [{transform_indices = @transform_0, window_bounds = array<i64: 1, 4, 128>}, {transform_indices = @transform_1, window_bounds = array<i64: 1, 128, 4>}, {pipeline_mode = #tpu.pipeline_mode<synchronous>, transform_indices = @transform_2, window_bounds = array<i64: 6, 4>}, {transform_indices = @transform_3, window_bounds = array<i64: 1, 6, 128>}, {transform_indices = @transform_4, window_bounds = array<i64: 1, 4, 4>}]} {
    %c0 = arith.constant 0 : index
    %c0_0 = arith.constant 0 : index
    %c0_1 = arith.constant 0 : index
    %0 = vector.load %arg2[%c0, %c0_0, %c0_1] : memref<1x4x128xf32, #tpu.memory_space<vmem>>, vector<1x4x128xf32>
    %1 = vector.shape_cast %0 : vector<1x4x128xf32> to vector<4x128xf32>
    %2 = arith.truncf %1 : vector<4x128xf32> to vector<4x128xbf16>
    %c0_2 = arith.constant 0 : index
    %c0_3 = arith.constant 0 : index
    %c0_4 = arith.constant 0 : index
    %3 = vector.load %arg3[%c0_2, %c0_3, %c0_4] : memref<1x128x4xf32, #tpu.memory_space<vmem>>, vector<1x128x4xf32>
    %4 = vector.shape_cast %3 : vector<1x128x4xf32> to vector<128x4xf32>
    %5 = arith.truncf %4 : vector<128x4xf32> to vector<128x4xbf16>
    %c0_5 = arith.constant 0 : index
    %c0_6 = arith.constant 0 : index
    %6 = vector.load %arg4[%c0_5, %c0_6] : memref<6x4xbf16, #tpu.memory_space<vmem>>, vector<6x4xbf16>
    %cst = arith.constant dense<0.000000e+00> : vector<6x128xf32>
    %7 = tpu.matmul %6, %2, %cst {dimension_numbers = #tpu.dot_dimension_numbers<[1], [0], [0], [1], [0, 0, 1, 1], [], []>} : vector<6x4xbf16>, vector<4x128xbf16>, vector<6x128xf32> -> vector<6x128xf32>
    %8 = arith.truncf %7 : vector<6x128xf32> to vector<6x128xbf16>
    %c0_7 = arith.constant 0 : index
    %c0_8 = arith.constant 0 : index
    %c0_9 = arith.constant 0 : index
    %9 = vector.load %arg5[%c0_7, %c0_8, %c0_9] : memref<1x6x128xbf16, #tpu.memory_space<vmem>>, vector<1x6x128xbf16>
    %10 = vector.shape_cast %9 : vector<1x6x128xbf16> to vector<6x128xbf16>
    %11 = vector.shape_cast %8 : vector<6x128xbf16> to vector<1x6x128xbf16>
    tpu.vector_store %arg5[%c0_7, %c0_8, %c0_9], %11 {strides = array<i32>} : memref<1x6x128xbf16, #tpu.memory_space<vmem>>, vector<1x6x128xbf16>,
    %c0_i32 = arith.constant 0 : i32
    %12 = arith.cmpi eq, %arg1, %c0_i32 : i32
    %13 = arith.extui %12 : i1 to i32
    %c0_i32_10 = arith.constant 0 : i32
    %14 = arith.cmpi ne, %13, %c0_i32_10 : i32
    scf.if %14 {
      %cst_17 = arith.constant 0.000000e+00 : f32
      %22 = vector.broadcast %cst_17 : f32 to vector<4x4xf32>
      %c0_18 = arith.constant 0 : index
      %c0_19 = arith.constant 0 : index
      %23 = vector.load %arg7[%c0_18, %c0_19] : memref<4x4xf32, #tpu.memory_space<vmem>>, vector<4x4xf32>
      tpu.vector_store %arg7[%c0_18, %c0_19], %22 {strides = array<i32>} : memref<4x4xf32, #tpu.memory_space<vmem>>, vector<4x4xf32>,
    } else {
    }
    %c0_11 = arith.constant 0 : index
    %c0_12 = arith.constant 0 : index
    %15 = vector.load %arg7[%c0_11, %c0_12] : memref<4x4xf32, #tpu.memory_space<vmem>>, vector<4x4xf32>
    %cst_13 = arith.constant dense<0.000000e+00> : vector<4x4xf32>
    %16 = tpu.matmul %2, %5, %cst_13 {dimension_numbers = #tpu.dot_dimension_numbers<[1], [0], [0], [1], [0, 0, 1, 1], [], []>} : vector<4x128xbf16>, vector<128x4xbf16>, vector<4x4xf32> -> vector<4x4xf32>
    %17 = arith.addf %15, %16 : vector<4x4xf32>
    %c0_14 = arith.constant 0 : index
    %c0_15 = arith.constant 0 : index
    %18 = vector.load %arg7[%c0_14, %c0_15] : memref<4x4xf32, #tpu.memory_space<vmem>>, vector<4x4xf32>
    tpu.vector_store %arg7[%c0_14, %c0_15], %17 {strides = array<i32>} : memref<4x4xf32, #tpu.memory_space<vmem>>, vector<4x4xf32>,
    %c1_i32 = arith.constant 1 : i32
    %19 = arith.cmpi eq, %arg1, %c1_i32 : i32
    %20 = arith.extui %19 : i1 to i32
    %c0_i32_16 = arith.constant 0 : i32
    %21 = arith.cmpi ne, %20, %c0_i32_16 : i32
    scf.if %21 {
      %c0_17 = arith.constant 0 : index
      %c0_18 = arith.constant 0 : index
      %22 = vector.load %arg7[%c0_17, %c0_18] : memref<4x4xf32, #tpu.memory_space<vmem>>, vector<4x4xf32>
      %cst_19 = arith.constant dense<0xFF800000> : vector<4xf32>
      %23 = vector.multi_reduction <maximumf>, %22, %cst_19 [1] : vector<4x4xf32> to vector<4xf32>
      %24 = vector.shape_cast %23 : vector<4xf32> to vector<4x1xf32>
      %25 = vector.broadcast %24 : vector<4x1xf32> to vector<4x4xf32>
      %26 = arith.subf %22, %25 : vector<4x4xf32>
      %27 = math.exp %26 : vector<4x4xf32>
      %cst_20 = arith.constant dense<0.000000e+00> : vector<4xf32>
      %28 = vector.multi_reduction <add>, %27, %cst_20 [1] : vector<4x4xf32> to vector<4xf32>
      %29 = vector.shape_cast %28 : vector<4xf32> to vector<4x1xf32>
      %30 = vector.broadcast %29 : vector<4x1xf32> to vector<4x4xf32>
      %31 = arith.divf %27, %30 : vector<4x4xf32>
      %32 = arith.truncf %31 : vector<4x4xf32> to vector<4x4xbf16>
      %c0_21 = arith.constant 0 : index
      %c0_22 = arith.constant 0 : index
      %c0_23 = arith.constant 0 : index
      %33 = vector.load %arg6[%c0_21, %c0_22, %c0_23] : memref<1x4x4xbf16, #tpu.memory_space<vmem>>, vector<1x4x4xbf16>
      %34 = vector.shape_cast %33 : vector<1x4x4xbf16> to vector<4x4xbf16>
      %35 = vector.shape_cast %32 : vector<4x4xbf16> to vector<1x4x4xbf16>
      tpu.vector_store %arg6[%c0_21, %c0_22, %c0_23], %35 {strides = array<i32>} : memref<1x4x4xbf16, #tpu.memory_space<vmem>>, vector<1x4x4xbf16>,
    } else {
    }
    return
  }
  func.func @transform_0(%arg0: i32, %arg1: i32) -> (i32, i32, i32) {
    %c0_i32 = arith.constant 0 : i32
    %c0_i32_0 = arith.constant 0 : i32
    return %arg0, %c0_i32, %arg1 : i32, i32, i32
  }
  func.func @transform_1(%arg0: i32, %arg1: i32) -> (i32, i32, i32) {
    %c0_i32 = arith.constant 0 : i32
    %c0_i32_0 = arith.constant 0 : i32
    return %arg0, %arg1, %c0_i32 : i32, i32, i32
  }
  func.func @transform_2(%arg0: i32, %arg1: i32) -> (i32, i32) {
    %c0_i32 = arith.constant 0 : i32
    %c0_i32_0 = arith.constant 0 : i32
    %c0_i32_1 = arith.constant 0 : i32
    return %c0_i32, %c0_i32_0 : i32, i32
  }
  func.func @transform_3(%arg0: i32, %arg1: i32) -> (i32, i32, i32) {
    %c0_i32 = arith.constant 0 : i32
    %c0_i32_0 = arith.constant 0 : i32
    return %arg0, %c0_i32, %arg1 : i32, i32, i32
  }
  func.func @transform_4(%arg0: i32, %arg1: i32) -> (i32, i32, i32) {
    %c0_i32 = arith.constant 0 : i32
    %c0_i32_0 = arith.constant 0 : i32
    %c0_i32_1 = arith.constant 0 : i32
    return %arg0, %c0_i32, %c0_i32_0 : i32, i32, i32
  }
}

module attributes {stable_mosaic.version = 11 : i64} {
  func.func @_out_kernel(%arg0: i32, %arg1: i32, %arg2: memref<1x2x128xbf16, #tpu.memory_space<vmem>>, %arg3: memref<1x4x128xf32, #tpu.memory_space<vmem>>, %arg4: memref<1x4x4xbf16, #tpu.memory_space<vmem>>, %arg5: memref<4x2xbf16, #tpu.memory_space<vmem>>, %arg6: memref<4x4xbf16, #tpu.memory_space<vmem>>, %arg7: memref<4x1xf32, #tpu.memory_space<vmem>>, %arg8: memref<1x4x128xf32, #tpu.memory_space<vmem>>) attributes {dimension_semantics = [#tpu.dimension_semantics<parallel>, #tpu.dimension_semantics<parallel>], iteration_bounds = array<i64: 2, 2>, scalar_prefetch = 0 : i64, scratch_operands = 0 : i64, tpu.core_type = #tpu.core_type<tc>, window_params = [{transform_indices = @transform_0, window_bounds = array<i64: 1, 2, 128>}, {transform_indices = @transform_1, window_bounds = array<i64: 1, 4, 128>}, {transform_indices = @transform_2, window_bounds = array<i64: 1, 4, 4>}, {pipeline_mode = #tpu.pipeline_mode<synchronous>, transform_indices = @transform_3, window_bounds = array<i64: 4, 2>}, {pipeline_mode = #tpu.pipeline_mode<synchronous>, transform_indices = @transform_4, window_bounds = array<i64: 4, 4>}, {pipeline_mode = #tpu.pipeline_mode<synchronous>, transform_indices = @transform_5, window_bounds = array<i64: 4, 1>}, {transform_indices = @transform_6, window_bounds = array<i64: 1, 4, 128>}]} {
    %c0 = arith.constant 0 : index
    %c0_0 = arith.constant 0 : index
    %c0_1 = arith.constant 0 : index
    %0 = vector.load %arg2[%c0, %c0_0, %c0_1] : memref<1x2x128xbf16, #tpu.memory_space<vmem>>, vector<1x2x128xbf16>
    %1 = vector.shape_cast %0 : vector<1x2x128xbf16> to vector<2x128xbf16>
    %c0_2 = arith.constant 0 : index
    %c0_3 = arith.constant 0 : index
    %c0_4 = arith.constant 0 : index
    %2 = vector.load %arg3[%c0_2, %c0_3, %c0_4] : memref<1x4x128xf32, #tpu.memory_space<vmem>>, vector<1x4x128xf32>
    %3 = vector.shape_cast %2 : vector<1x4x128xf32> to vector<4x128xf32>
    %4 = arith.truncf %3 : vector<4x128xf32> to vector<4x128xbf16>
    %c0_5 = arith.constant 0 : index
    %c0_6 = arith.constant 0 : index
    %c0_7 = arith.constant 0 : index
    %5 = vector.load %arg4[%c0_5, %c0_6, %c0_7] : memref<1x4x4xbf16, #tpu.memory_space<vmem>>, vector<1x4x4xbf16>
    %6 = vector.shape_cast %5 : vector<1x4x4xbf16> to vector<4x4xbf16>
    %cst = arith.constant dense<0.000000e+00> : vector<4x128xf32>
    %7 = tpu.matmul %6, %4, %cst {dimension_numbers = #tpu.dot_dimension_numbers<[1], [0], [0], [1], [0, 0, 1, 1], [], []>} : vector<4x4xbf16>, vector<4x128xbf16>, vector<4x128xf32> -> vector<4x128xf32>
    %c0_8 = arith.constant 0 : index
    %c0_9 = arith.constant 0 : index
    %8 = vector.load %arg6[%c0_8, %c0_9] : memref<4x4xbf16, #tpu.memory_space<vmem>>, vector<4x4xbf16>
    %9 = arith.truncf %7 : vector<4x128xf32> to vector<4x128xbf16>
    %cst_10 = arith.constant dense<0.000000e+00> : vector<4x128xf32>
    %10 = tpu.matmul %8, %9, %cst_10 {dimension_numbers = #tpu.dot_dimension_numbers<[1], [0], [0], [1], [0, 0, 1, 1], [], []>} : vector<4x4xbf16>, vector<4x128xbf16>, vector<4x128xf32> -> vector<4x128xf32>
    %c0_11 = arith.constant 0 : index
    %c0_12 = arith.constant 0 : index
    %11 = vector.load %arg5[%c0_11, %c0_12] : memref<4x2xbf16, #tpu.memory_space<vmem>>, vector<4x2xbf16>
    %cst_13 = arith.constant dense<0.000000e+00> : vector<4x128xf32>
    %12 = tpu.matmul %11, %1, %cst_13 {dimension_numbers = #tpu.dot_dimension_numbers<[1], [0], [0], [1], [0, 0, 1, 1], [], []>} : vector<4x2xbf16>, vector<2x128xbf16>, vector<4x128xf32> -> vector<4x128xf32>
    %13 = arith.addf %12, %10 : vector<4x128xf32>
    %cst_14 = arith.constant 2.000000e+00 : f32
    %14 = vector.broadcast %cst_14 : f32 to vector<4x128xf32>
    %15 = arith.mulf %14, %3 : vector<4x128xf32>
    %16 = arith.addf %13, %15 : vector<4x128xf32>
    %c0_15 = arith.constant 0 : index
    %c0_16 = arith.constant 0 : index
    %17 = vector.load %arg7[%c0_15, %c0_16] : memref<4x1xf32, #tpu.memory_space<vmem>>, vector<4x1xf32>
    %18 = vector.broadcast %17 : vector<4x1xf32> to vector<4x128xf32>
    %19 = arith.addf %16, %18 : vector<4x128xf32>
    %c0_17 = arith.constant 0 : index
    %c0_18 = arith.constant 0 : index
    %c0_19 = arith.constant 0 : index
    %20 = vector.load %arg8[%c0_17, %c0_18, %c0_19] : memref<1x4x128xf32, #tpu.memory_space<vmem>>, vector<1x4x128xf32>
    %21 = vector.shape_cast %20 : vector<1x4x128xf32> to vector<4x128xf32>
    %22 = vector.shape_cast %19 : vector<4x128xf32> to vector<1x4x128xf32>
    tpu.vector_store %arg8[%c0_17, %c0_18, %c0_19], %22 {strides = array<i32>} : memref<1x4x128xf32, #tpu.memory_space<vmem>>, vector<1x4x128xf32>,
    return
  }
  func.func @transform_0(%arg0: i32, %arg1: i32) -> (i32, i32, i32) {
    %c0_i32 = arith.constant 0 : i32
    %c0_i32_0 = arith.constant 0 : i32
    return %arg0, %c0_i32, %arg1 : i32, i32, i32
  }
  func.func @transform_1(%arg0: i32, %arg1: i32) -> (i32, i32, i32) {
    %c0_i32 = arith.constant 0 : i32
    %c0_i32_0 = arith.constant 0 : i32
    return %arg0, %c0_i32, %arg1 : i32, i32, i32
  }
  func.func @transform_2(%arg0: i32, %arg1: i32) -> (i32, i32, i32) {
    %c0_i32 = arith.constant 0 : i32
    %c0_i32_0 = arith.constant 0 : i32
    %c0_i32_1 = arith.constant 0 : i32
    return %arg0, %c0_i32, %c0_i32_0 : i32, i32, i32
  }
  func.func @transform_3(%arg0: i32, %arg1: i32) -> (i32, i32) {
    %c0_i32 = arith.constant 0 : i32
    %c0_i32_0 = arith.constant 0 : i32
    %c0_i32_1 = arith.constant 0 : i32
    return %c0_i32, %c0_i32_0 : i32, i32
  }
  func.func @transform_4(%arg0: i32, %arg1: i32) -> (i32, i32) {
    %c0_i32 = arith.constant 0 : i32
    %c0_i32_0 = arith.constant 0 : i32
    %c0_i32_1 = arith.constant 0 : i32
    return %c0_i32, %c0_i32_0 : i32, i32
  }
  func.func @transform_5(%arg0: i32, %arg1: i32) -> (i32, i32) {
    %c0_i32 = arith.constant 0 : i32
    %c0_i32_0 = arith.constant 0 : i32
    %c0_i32_1 = arith.constant 0 : i32
    return %c0_i32, %c0_i32_0 : i32, i32
  }
  func.func @transform_6(%arg0: i32, %arg1: i32) -> (i32, i32, i32) {
    %c0_i32 = arith.constant 0 : i32
    %c0_i32_0 = arith.constant 0 : i32
    return %arg0, %c0_i32, %arg1 : i32, i32, i32
  }
}

</mosaic_0001>

<llo_original>
// kernel: non_local_forward.3
$region0: #{non_local_forward.3}
  #allocation0 [shape = 'u32[]', space=smem, size = 0x4, offset = 0x4, fixed_abs, tag = 'smem constant byte address 0x4 - core index']
  #allocation1 [shape = 'u32[144,128]{1,0:T(1,128)}', space=vmem, size = 0x12000, scoped, tag = 'internal scratch']
  #allocation2 [shape = 'f32[4,4]{1,0:T(4,128)}', space=vmem, size = 0x800, scoped, tag = 'scratch operand']
  %s0 = inlined_call_operand.vmem [shape: f32[2,4,256], index: 0, kind: input, shape index: {}]
  %s1 = inlined_call_operand.vmem [shape: f32[2,256,4], index: 1, kind: input, shape index: {}]
  %s2 = inlined_call_operand.vmem [shape: bf16[6,4], index: 2, kind: input, shape index: {}]
  %s3 = inlined_call_operand.vmem [shape: bf16[2,6,256], index: 3, kind: output, shape index: {0}]
  %s4 = inlined_call_operand.vmem [shape: bf16[2,4,4], index: 4, kind: output, shape index: {1}]
  %5 = xla_tuple %s3, %s4
  %s6 = sld [smem:[#allocation0]]
  $region61: #{non_local_forward.3} parent=0
    _
  %s8 = ssub.s32 1, %s6
  %s9 = scalar_select 0, %s8, %s6
  loop: start=0, step=1, limit=6
  $region2: #{non_local_forward.3} parent=0 // loop_pre_header
    _
  $region3: #{non_local_forward.3} parent=0 // loop_header
    %s11 = sphi 0, %s15
    %p12 = scmp.ge.s32.totalorder %s11, 6
    %s18 = sphi 0, %s30
    %s19 = sphi 0, %s26
    %s20 = sphi 0, %s18
    %s21 = sphi 0, %s19
    %s22 = sphi 0, %s20
    %s23 = sphi 0, %s21
    %s35 = sphi 0, %s37
    %s38 = sphi 0, %s35
    %s39 = sphi 0, %s38
    %s55 = sphi 0, %s39
    %s63 = sphi 0, %s65
    %s66 = sphi 0, %s63
    %s67 = sphi 0, %s66
    %s83 = sphi 0, %s67
    %s87 = sphi 0, %s87
    %s89 = sphi 0, %s87
    %s90 = sphi 0, %s89
    %s104 = sphi 0, %s90
    %s112 = sphi 0, %s114
    %s115 = sphi 0, %s112
    %s116 = sphi 0, %s115
    %s132 = sphi 0, %s116
    %s138 = sphi 0, %s140
    %s141 = sphi 0, %s138
    %s142 = sphi 0, %s141
    %s158 = sphi 0, %s142
  $region4: #{non_local_forward.3} parent=0 // loop_header_branch
    %14 = sbr.rel (%p12) target = $region8
  $region5: #{non_local_forward.3} parent=0 // loop_body
    %s16 = ssub.s32 %s11, 1
    %s17 = ssub.s32 %s11, 2
    %s24 = sadd.s32 1, %s19
    %p25 = scmp.ge.s32.totalorder %s24, 2
    %s26 = scalar_select %p25, 0, %s24
    %s27 = sadd.s32 1, %s18
    %s28 = scalar_select %p25, %s27, %s18
    %p29 = scmp.ge.s32.totalorder %s28, 2
    %s30 = scalar_select %p29, 0, %s28
    %s31 = ssub.s32 %s18, %s30
    %s32 = ssub.s32 %s19, %s26
    %s33 = sor.u32 %s31, %s32
    %p34 = scmp.eq.s32.totalorder %s33, 0
    %s36 = sadd.s32 %s35, 1
    %s37 = scalar_select %p34, %s35, %s36
    %p40 = pneg %p34
    %p41 = scmp.eq.s32.totalorder %s11, 3
    %p42 = por %p40, %p41
    %p43 = scmp.ne.s32.totalorder %s35, %s38
    %p44 = scmp.eq.s32.totalorder %s11, 0
    %p45 = por %p43, %p44
    %p46 = scmp.ne.s32.totalorder %s35, %s38
    %p47 = scmp.eq.s32.totalorder %s16, 3
    %p48 = por %p46, %p47
    %p49 = scmp.ne.s32.totalorder %s38, %s39
    %p50 = scmp.eq.s32.totalorder %s16, 0
    %p51 = por %p49, %p50
    %p52 = scmp.ne.s32.totalorder %s38, %s39
    %p53 = scmp.eq.s32.totalorder %s17, 3
    %p54 = por %p52, %p53
    %p56 = scmp.ne.s32.totalorder %s39, %s55
    %p57 = scmp.eq.s32.totalorder %s17, 0
    %p58 = por %p56, %p57
    %s59 = ssub.s32 %s18, %s30
    %s60 = ssub.s32 %s19, %s26
    %s61 = sor.u32 %s59, %s60
    %p62 = scmp.eq.s32.totalorder %s61, 0
    %s64 = sadd.s32 %s63, 1
    %s65 = scalar_select %p62, %s63, %s64
    %p68 = pneg %p62
    %p69 = scmp.eq.s32.totalorder %s11, 3
    %p70 = por %p68, %p69
    %p71 = scmp.ne.s32.totalorder %s63, %s66
    %p72 = scmp.eq.s32.totalorder %s11, 0
    %p73 = por %p71, %p72
    %p74 = scmp.ne.s32.totalorder %s63, %s66
    %p75 = scmp.eq.s32.totalorder %s16, 3
    %p76 = por %p74, %p75
    %p77 = scmp.ne.s32.totalorder %s66, %s67
    %p78 = scmp.eq.s32.totalorder %s16, 0
    %p79 = por %p77, %p78
    %p80 = scmp.ne.s32.totalorder %s66, %s67
    %p81 = scmp.eq.s32.totalorder %s17, 3
    %p82 = por %p80, %p81
    %p84 = scmp.ne.s32.totalorder %s67, %s83
    %p85 = scmp.eq.s32.totalorder %s17, 0
    %p86 = por %p84, %p85
    %s88 = sadd.s32 %s87, 1
    %p91 = scmp.eq.s32.totalorder %s11, 3
    %p92 = scmp.ne.s32.totalorder %s87, %s89
    %p93 = scmp.eq.s32.totalorder %s11, 0
    %p94 = por %p92, %p93
    %p95 = scmp.ne.s32.totalorder %s87, %s89
    %p96 = scmp.eq.s32.totalorder %s16, 3
    %p97 = por %p95, %p96
    %p98 = scmp.ne.s32.totalorder %s89, %s90
    %p99 = scmp.eq.s32.totalorder %s16, 0
    %p100 = por %p98, %p99
    %p101 = scmp.ne.s32.totalorder %s89, %s90
    %p102 = scmp.eq.s32.totalorder %s17, 3
    %p103 = por %p101, %p102
    %p105 = scmp.ne.s32.totalorder %s90, %s104
    %p106 = scmp.eq.s32.totalorder %s17, 0
    %p107 = por %p105, %p106
    %s108 = ssub.s32 %s18, %s30
    %s109 = ssub.s32 %s19, %s26
    %s110 = sor.u32 %s108, %s109
    %p111 = scmp.eq.s32.totalorder %s110, 0
    %s113 = sadd.s32 %s112, 1
    %s114 = scalar_select %p111, %s112, %s113
    %p117 = pneg %p111
    %p118 = scmp.eq.s32.totalorder %s11, 3
    %p119 = por %p117, %p118
    %p120 = scmp.ne.s32.totalorder %s112, %s115
    %p121 = scmp.eq.s32.totalorder %s11, 0
    %p122 = por %p120, %p121
    %p123 = scmp.ne.s32.totalorder %s112, %s115
    %p124 = scmp.eq.s32.totalorder %s16, 3
    %p125 = por %p123, %p124
    %p126 = scmp.ne.s32.totalorder %s115, %s116
    %p127 = scmp.eq.s32.totalorder %s16, 0
    %p128 = por %p126, %p127
    %p129 = scmp.ne.s32.totalorder %s115, %s116
    %p130 = scmp.eq.s32.totalorder %s17, 3
    %p131 = por %p129, %p130
    %p133 = scmp.ne.s32.totalorder %s116, %s132
    %p134 = scmp.eq.s32.totalorder %s17, 0
    %p135 = por %p133, %p134
    %s136 = ssub.s32 %s18, %s30
    %p137 = scmp.eq.s32.totalorder %s136, 0
    %s139 = sadd.s32 %s138, 1
    %s140 = scalar_select %p137, %s138, %s139
    %p143 = pneg %p137
    %p144 = scmp.eq.s32.totalorder %s11, 3
    %p145 = por %p143, %p144
    %p146 = scmp.ne.s32.totalorder %s138, %s141
    %p147 = scmp.eq.s32.totalorder %s11, 0
    %p148 = por %p146, %p147
    %p149 = scmp.ne.s32.totalorder %s138, %s141
    %p150 = scmp.eq.s32.totalorder %s16, 3
    %p151 = por %p149, %p150
    %p152 = scmp.ne.s32.totalorder %s141, %s142
    %p153 = scmp.eq.s32.totalorder %s16, 0
    %p154 = por %p152, %p153
    %p155 = scmp.ne.s32.totalorder %s141, %s142
    %p156 = scmp.eq.s32.totalorder %s17, 3
    %p157 = por %p155, %p156
    %p159 = scmp.ne.s32.totalorder %s142, %s158
    %p160 = scmp.eq.s32.totalorder %s17, 0
    %p161 = por %p159, %p160
    %p162 = scmp.le.s32.totalorder 1, %s11
    %p163 = scmp.lt.s32.totalorder %s11, 5
    %p164 = pnand %p162, %p163
    %p165 = pneg %p164
    // Predicated region
    $region9: #{non_local_forward.3} parent=5 // pred_check
      _
    $region10: #{non_local_forward.3} parent=5 // pred_check_branch
      %167 = sbr.rel (%p164) target = $region12
    $region11: #{non_local_forward.3} parent=5 // pred_region
      %s168 = ssub.s32 %s11, 1
      // Predicated region
      $region13: #{non_local_forward.3} parent=11 // pred_check
        %p169 = pneg %p100
      $region14: #{non_local_forward.3} parent=11 // pred_check_branch
        %171 = sbr.rel (%p169) target = $region16
      $region15: #{non_local_forward.3} parent=11 // pred_region
        _
      $region16: #{non_local_forward.3} parent=11 // pred_fallthru
        _
    $region12: #{non_local_forward.3} parent=5 // pred_fallthru
      _
    %p172 = scmp.lt.s32.totalorder %s11, 4
    // Predicated region
    $region17: #{non_local_forward.3} parent=5 // pred_check
      %p173 = pneg %p172
    $region18: #{non_local_forward.3} parent=5 // pred_check_branch
      %175 = sbr.rel (%p173) target = $region20
    $region19: #{non_local_forward.3} parent=5 // pred_region
      // Predicated region
      $region21: #{non_local_forward.3} parent=19 // pred_check
        %p176 = pneg %p45
      $region22: #{non_local_forward.3} parent=19 // pred_check_branch
        %178 = sbr.rel (%p176) target = $region24
      $region23: #{non_local_forward.3} parent=19 // pred_region
        %p179 = scmp.lt.s32.totalorder %s18, 1
        %s180 = scalar_select %p179, %s18, 1
        %p181 = scmp.lt.s32.totalorder %s19, 1
        %s182 = scalar_select %p181, %s19, 1
        %s183 = smul.addr %s180, 2
        %s184 = sadd.s32 %s182, %s183
        %s185 = smul.addr %s184, 4
        %s186 = scalar_lea.vmem %s0, %s185
      $region24: #{non_local_forward.3} parent=19 // pred_fallthru
        _
      // Predicated region
      $region25: #{non_local_forward.3} parent=19 // pred_check
        %p187 = pneg %p73
      $region26: #{non_local_forward.3} parent=19 // pred_check_branch
        %189 = sbr.rel (%p187) target = $region28
      $region27: #{non_local_forward.3} parent=19 // pred_region
        %s190 = smul.u32 16, %s19
        %p191 = scmp.lt.s32.totalorder %s18, 1
        %s192 = scalar_select %p191, %s18, 1
        %p193 = scmp.lt.s32.totalorder %s190, 31
        %s194 = scalar_select %p193, %s190, 31
        %s195 = smul.addr %s192, 32
        %s196 = sadd.s32 %s194, %s195
        %s197 = smul.addr %s196, 8
        %s198 = scalar_lea.vmem %s1, %s197
        %s199 = smul.u32 16, %s19
      $region28: #{non_local_forward.3} parent=19 // pred_fallthru
        _
    $region20: #{non_local_forward.3} parent=5 // pred_fallthru
      _
    %p200 = scmp.le.s32.totalorder 1, %s11
    %p201 = scmp.lt.s32.totalorder %s11, 5
    %p202 = pnand %p200, %p201
    %p203 = pneg %p202
    // Predicated region
    $region29: #{non_local_forward.3} parent=5 // pred_check
      _
    $region30: #{non_local_forward.3} parent=5 // pred_check_branch
      %205 = sbr.rel (%p202) target = $region32
    $region31: #{non_local_forward.3} parent=5 // pred_region
      %s206 = ssub.s32 %s11, 1
      %p207 = scmp.lt.s32.totalorder %s20, 1
      %s208 = scalar_select %p207, %s20, 1
      %p209 = scmp.lt.s32.totalorder %s21, 1
      %s210 = scalar_select %p209, %s21, 1
      %s211 = smul.addr %s208, 2
      %s212 = sadd.s32 %s210, %s211
      %s213 = smul.addr %s212, 4
      %s214 = scalar_lea.vmem %s0, %s213
      %p215 = pneg %p51
      %p216 = pneg %p48
      %s217 = smul.u32 16, %s21
      %p218 = scmp.lt.s32.totalorder %s20, 1
      %s219 = scalar_select %p218, %s20, 1
      %p220 = scmp.lt.s32.totalorder %s217, 31
      %s221 = scalar_select %p220, %s217, 31
      %s222 = smul.addr %s219, 32
      %s223 = sadd.s32 %s221, %s222
      %s224 = smul.addr %s223, 8
      %s225 = scalar_lea.vmem %s1, %s224
      %p226 = pneg %p79
      %p227 = pneg %p76
      %p228 = pneg %p100
      %p229 = pneg %p97
      %p230 = pneg %p128
      %p231 = pneg %p125
      %p232 = scmp.lt.s32.totalorder %s20, 1
      %s233 = scalar_select %p232, %s20, 1
      %p234 = scmp.lt.s32.totalorder %s21, 1
      %s235 = scalar_select %p234, %s21, 1
      %s236 = smul.addr %s233, 2
      %s237 = sadd.s32 %s235, %s236
      %s238 = smul.addr %s237, 4
      %s239 = scalar_lea.vmem %s3, %s238
      %p240 = pneg %p154
      %p241 = pneg %p151
      %p242 = scmp.lt.s32.totalorder %s20, 1
      %s243 = scalar_select %p242, %s20, 1
      %s244 = smul.addr %s243, 2
      %s245 = scalar_lea.vmem %s4, %s244
      %p246 = scmp.lt.s32.totalorder %s20, 1
      %s247 = scalar_select %p246, %s20, 1
      %p248 = scmp.lt.s32.totalorder %s21, 1
      %s249 = scalar_select %p248, %s21, 1
      %s250 = smul.addr %s247, 2
      %s251 = sadd.s32 %s249, %s250
      %s252 = smul.addr %s251, 4
      %s253 = scalar_lea.vmem %s0, %s252
      %s254 = smul.u32 16, %s21
      %p255 = scmp.lt.s32.totalorder %s20, 1
      %s256 = scalar_select %p255, %s20, 1
      %p257 = scmp.lt.s32.totalorder %s254, 31
      %s258 = scalar_select %p257, %s254, 31
      %s259 = smul.addr %s256, 32
      %s260 = sadd.s32 %s258, %s259
      %s261 = smul.addr %s260, 8
      %s262 = scalar_lea.vmem %s1, %s261
      %s263 = smul.u32 16, %s21
      %p264 = scmp.lt.s32.totalorder %s20, 1
      %s265 = scalar_select %p264, %s20, 1
      %p266 = scmp.lt.s32.totalorder %s21, 1
      %s267 = scalar_select %p266, %s21, 1
      %s268 = smul.addr %s265, 2
      %s269 = sadd.s32 %s267, %s268
      %s270 = smul.addr %s269, 4
      %s271 = scalar_lea.vmem %s3, %s270
      %p272 = scmp.lt.s32.totalorder %s20, 1
      %s273 = scalar_select %p272, %s20, 1
      %s274 = smul.addr %s273, 2
      %s275 = scalar_lea.vmem %s4, %s274
      %v277 = vld [vmem:[%s253] sm:$0xf]
      %v278 = vpack.c.bf16 %v277, %v277
      %v279 = vld [vmem:[%s262] sm:$0xff]
      %v280 = vld [vmem:[%s262 + $0x8] sm:$0xff]
      %v281 = vld [vmem:[%s262 + $0x10] sm:$0xff]
      %v282 = vld [vmem:[%s262 + $0x18] sm:$0xff]
      %v283 = vld [vmem:[%s262 + $0x20] sm:$0xff]
      %v284 = vld [vmem:[%s262 + $0x28] sm:$0xff]
      %v285 = vld [vmem:[%s262 + $0x30] sm:$0xff]
      %v286 = vld [vmem:[%s262 + $0x38] sm:$0xff]
      %v287 = vld [vmem:[%s262 + $0x40] sm:$0xff]
      %v288 = vld [vmem:[%s262 + $0x48] sm:$0xff]
      %v289 = vld [vmem:[%s262 + $0x50] sm:$0xff]
      %v290 = vld [vmem:[%s262 + $0x58] sm:$0xff]
      %v291 = vld [vmem:[%s262 + $0x60] sm:$0xff]
      %v292 = vld [vmem:[%s262 + $0x68] sm:$0xff]
      %v293 = vld [vmem:[%s262 + $0x70] sm:$0xff]
      %v294 = vld [vmem:[%s262 + $0x78] sm:$0xff]
      %v295 = vpack.c.bf16 %v280, %v279
      %v296 = vpack.c.bf16 %v282, %v281
      %v297 = vpack.c.bf16 %v284, %v283
      %v298 = vpack.c.bf16 %v286, %v285
      %v299 = vpack.c.bf16 %v288, %v287
      %v300 = vpack.c.bf16 %v290, %v289
      %v301 = vpack.c.bf16 %v292, %v291
      %v302 = vpack.c.bf16 %v294, %v293
      %v303 = vld [vmem:[%s2] sm:$0x7]
      %vm304 = vcmask 31744
      %v306 = vsel %vm304, %v303, 0
      %vm308 = vcmask 1041408
      %v310 = vsel %vm308, %v278, 0
      %312 = vmatprep.subr.bf16.mxu0 0
      %313 = vmatpush1.bf16.msra.mxu0 0
      %314 = vmatprep.subr.bf16.mxu0 0
      %315 = vmatpush1.bf16.msra.mxu0 0
      %316 = vmatprep.subr.bf16.mxu0 0
      %317 = vmatpush1.bf16.msra.mxu0 0
      %318 = vmatprep.subr.bf16.mxu0 0
      %319 = vmatpush1.bf16.msra.mxu0 0
      %320 = vmatprep.subr.bf16.mxu0 0
      %321 = vmatpush1.bf16.msra.mxu0 0
      %322 = vmatprep.subr.bf16.mxu0 0
      %323 = vmatpush1.bf16.msra.mxu0 0
      %324 = vmatprep.subr.bf16.mxu0 0
      %325 = vmatpush1.bf16.msra.mxu0 0
      %326 = vmatprep.subr.bf16.mxu0 0
      %327 = vmatpush1.bf16.msra.mxu0 %v310
      %328 = vmatprep.subr.bf16.mxu0 0
      %329 = vmatpush2.bf16.msra.mxu0 0
      %330 = vmatprep.subr.bf16.mxu0 0
      %331 = vmatpush2.bf16.msra.mxu0 0
      %332 = vmatprep.subr.bf16.mxu0 0
      %333 = vmatpush2.bf16.msra.mxu0 0
      %334 = vmatprep.subr.bf16.mxu0 0
      %335 = vmatpush2.bf16.msra.mxu0 0
      %336 = vmatprep.subr.bf16.mxu0 0
      %337 = vmatpush2.bf16.msra.mxu0 0
      %338 = vmatprep.subr.bf16.mxu0 0
      %339 = vmatpush2.bf16.msra.mxu0 0
      %340 = vmatprep.subr.bf16.mxu0 0
      %341 = vmatpush2.bf16.msra.mxu0 0
      %342 = vmatprep.subr.bf16.mxu0 0
      %343 = vmatpush2.bf16.msra.mxu0 0
      %344 = vmatprep.mubr.bf16.mxu0 0
      %345 = vmatmul.mubr.bf16.gmra.mxu0 %v306
      %v346 = vpop.f32.mrf.mxu0
      %v347 = vadd.f32 0.0, %v346
      %v348 = vpop.f32.mrf.mxu0
      %v349 = vpop.f32.mrf.mxu0
      %v350 = vpop.f32.mrf.mxu0
      %351 = vdwg.mxu0
      %v352 = vpack.c.bf16 %v347, %v347
      %353 = vst [vmem:[%s271] sm:$0x7] %v352
      %p354 = scmp.eq.s32.totalorder %s21, 0
      // Predicated region
      $region33: #{non_local_forward.3} parent=31 // pred_check
        %p355 = pneg %p354
      $region34: #{non_local_forward.3} parent=31 // pred_check_branch
        %357 = sbr.rel (%p355) target = $region36
      $region35: #{non_local_forward.3} parent=31 // pred_region
        %vm358 = vcmask 27648
        %359 = vst.msk [vmem:[#allocation2] sm:$0xf] %vm358, 0.0
      $region36: #{non_local_forward.3} parent=31 // pred_fallthru
        _
      %v360 = vld [vmem:[#allocation2] sm:$0xf]
      %361 = vmatprep.subr.bf16.mxu0 0
      %362 = vmatpush1.bf16.msra.mxu0 %v302
      %363 = vmatprep.subr.bf16.mxu0 0
      %364 = vmatpush1.bf16.msra.mxu0 %v301
      %365 = vmatprep.subr.bf16.mxu0 0
      %366 = vmatpush1.bf16.msra.mxu0 %v300
      %367 = vmatprep.subr.bf16.mxu0 0
      %368 = vmatpush1.bf16.msra.mxu0 %v299
      %369 = vmatprep.subr.bf16.mxu0 0
      %370 = vmatpush1.bf16.msra.mxu0 %v298
      %371 = vmatprep.subr.bf16.mxu0 0
      %372 = vmatpush1.bf16.msra.mxu0 %v297
      %373 = vmatprep.subr.bf16.mxu0 0
      %374 = vmatpush1.bf16.msra.mxu0 %v296
      %375 = vmatprep.subr.bf16.mxu0 0
      %376 = vmatpush1.bf16.msra.mxu0 %v295
      %377 = vmatprep.subr.bf16.mxu0 0
      %378 = vmatpush2.bf16.msra.mxu0 0
      %379 = vmatprep.subr.bf16.mxu0 0
      %380 = vmatpush2.bf16.msra.mxu0 0
      %381 = vmatprep.subr.bf16.mxu0 0
      %382 = vmatpush2.bf16.msra.mxu0 0
      %383 = vmatprep.subr.bf16.mxu0 0
      %384 = vmatpush2.bf16.msra.mxu0 0
      %385 = vmatprep.subr.bf16.mxu0 0
      %386 = vmatpush2.bf16.msra.mxu0 0
      %387 = vmatprep.subr.bf16.mxu0 0
      %388 = vmatpush2.bf16.msra.mxu0 0
      %389 = vmatprep.subr.bf16.mxu0 0
      %390 = vmatpush2.bf16.msra.mxu0 0
      %391 = vmatprep.subr.bf16.mxu0 0
      %392 = vmatpush2.bf16.msra.mxu0 0
      %393 = vmatprep.mubr.bf16.mxu0 0
      %394 = vmatmul.mubr.bf16.gmra.mxu0 %v278
      %v395 = vpop.f32.mrf.mxu0
      %v396 = vadd.f32 0.0, %v395
      %v397 = vpop.f32.mrf.mxu0
      %v398 = vpop.f32.mrf.mxu0
      %v399 = vpop.f32.mrf.mxu0
      %400 = vdwg.mxu0
      %v401 = vadd.f32 %v360, %v396
      %vm402 = vcmask 27648
      %403 = vst.msk [vmem:[#allocation2] sm:$0xf] %vm402, %v401
      %p404 = scmp.eq.s32.totalorder %s21, 1
      // Predicated region
      $region37: #{non_local_forward.3} parent=31 // pred_check
        %p405 = pneg %p404
      $region38: #{non_local_forward.3} parent=31 // pred_check_branch
        %407 = sbr.rel (%p405) target = $region40
      $region39: #{non_local_forward.3} parent=31 // pred_region
        %v408 = vld [vmem:[#allocation2] sm:$0xf]
        %v409 = vsel %vm402, %v408, -inf
        %410 = vmax.xlane.f32.xlu0 %v409
        %v411 = vpop.xlane.xlu0 %410
        %v412 = vsub.f32 %v408, %v411
        %v413 = vmul.f32 %v412, 1.442695
        %v414 = vpow.pop %v413
        %v415 = vsel %vm402, %v414, 0.0
        %416 = vadd.xlane.f32.xlu0 %v415
        %v417 = vpop.xlane.xlu0 %416
        %v418 = vrcp.pop %v417
        %v419 = vmul.f32 %v414, %v418
        %v420 = vpack.c.bf16 %v419, %v419
        %vm421 = vcmask 25600
        %422 = vst.msk [vmem:[%s275] sm:$0x3] %vm421, %v420
      $region40: #{non_local_forward.3} parent=31 // pred_fallthru
        _
      %p423 = scmp.lt.s32.totalorder %s20, 1
      %s424 = scalar_select %p423, %s20, 1
      %p425 = scmp.lt.s32.totalorder %s21, 1
      %s426 = scalar_select %p425, %s21, 1
      %s427 = smul.addr %s424, 2
      %s428 = sadd.s32 %s426, %s427
      %s429 = smul.addr %s428, 4
      %s430 = scalar_lea.vmem %s3, %s429
      %p431 = scmp.lt.s32.totalorder %s20, 1
      %s432 = scalar_select %p431, %s20, 1
      %s433 = smul.addr %s432, 2
      %s434 = scalar_lea.vmem %s4, %s433
      // Predicated region
      $region41: #{non_local_forward.3} parent=31 // pred_check
        %p435 = pneg %p125
      $region42: #{non_local_forward.3} parent=31 // pred_check_branch
        %437 = sbr.rel (%p435) target = $region44
      $region43: #{non_local_forward.3} parent=31 // pred_region
        _
      $region44: #{non_local_forward.3} parent=31 // pred_fallthru
        _
      // Predicated region
      $region45: #{non_local_forward.3} parent=31 // pred_check
        %p438 = pneg %p151
      $region46: #{non_local_forward.3} parent=31 // pred_check_branch
        %440 = sbr.rel (%p438) target = $region48
      $region47: #{non_local_forward.3} parent=31 // pred_region
        _
      $region48: #{non_local_forward.3} parent=31 // pred_fallthru
        _
    $region32: #{non_local_forward.3} parent=5 // pred_fallthru
      _
    %p441 = scmp.le.s32.totalorder 2, %s11
    // Predicated region
    $region49: #{non_local_forward.3} parent=5 // pred_check
      %p442 = pneg %p441
    $region50: #{non_local_forward.3} parent=5 // pred_check_branch
      %444 = sbr.rel (%p442) target = $region52
    $region51: #{non_local_forward.3} parent=5 // pred_region
      %s445 = ssub.s32 %s11, 2
      // Predicated region
      $region53: #{non_local_forward.3} parent=51 // pred_check
        %p446 = pneg %p131
      $region54: #{non_local_forward.3} parent=51 // pred_check_branch
        %448 = sbr.rel (%p446) target = $region56
      $region55: #{non_local_forward.3} parent=51 // pred_region
        %p449 = scmp.lt.s32.totalorder %s22, 1
        %s450 = scalar_select %p449, %s22, 1
        %p451 = scmp.lt.s32.totalorder %s23, 1
        %s452 = scalar_select %p451, %s23, 1
        %s453 = smul.addr %s450, 2
        %s454 = sadd.s32 %s452, %s453
        %s455 = smul.addr %s454, 4
        %s456 = scalar_lea.vmem %s3, %s455
      $region56: #{non_local_forward.3} parent=51 // pred_fallthru
        _
      // Predicated region
      $region57: #{non_local_forward.3} parent=51 // pred_check
        %p457 = pneg %p157
      $region58: #{non_local_forward.3} parent=51 // pred_check_branch
        %459 = sbr.rel (%p457) target = $region60
      $region59: #{non_local_forward.3} parent=51 // pred_region
        %p460 = scmp.lt.s32.totalorder %s22, 1
        %s461 = scalar_select %p460, %s22, 1
        %s462 = smul.addr %s461, 2
        %s463 = scalar_lea.vmem %s4, %s462
      $region60: #{non_local_forward.3} parent=51 // pred_fallthru
        _
    $region52: #{non_local_forward.3} parent=5 // pred_fallthru
      _
  $region6: #{non_local_forward.3} parent=0 // loop_footer
    %s15 = sadd.s32 1, %s11
  $region7: #{non_local_forward.3} parent=0 // loop_footer_branch
    %10 = sbr.rel target = $region3
  $region8: #{non_local_forward.3} parent=0 // loop_exit
    _

// kernel: non_local_forward.4
$region0: #{non_local_forward.4}
  #allocation0 [shape = 'u32[]', space=smem, size = 0x4, offset = 0x4, fixed_abs, tag = 'smem constant byte address 0x4 - core index']
  #allocation1 [shape = 'u32[144,128]{1,0:T(1,128)}', space=vmem, size = 0x12000, scoped, tag = 'internal scratch']
  #allocation2 [shape = 'f32[128,1]{1,0:T(8,128)}', space=vmem, size = 0x10000, scoped, tag = 'scratch operand']
  #allocation3 [shape = 'f32[128,1]{1,0:T(8,128)}', space=vmem, size = 0x10000, scoped, tag = 'scratch operand']
  #allocation4 [shape = 'f32[128,2]{1,0:T(8,128)}', space=vmem, size = 0x10000, scoped, tag = 'scratch operand']
  %s0 = inlined_call_operand.vmem [shape: bf16[2,3,256,2], index: 0, kind: input, shape index: {}, may-alias: {0,2}]
  %s1 = inlined_call_operand.vmem [shape: bf16[2,3,2,256], index: 1, kind: input, shape index: {}]
  %s2 = inlined_call_operand.vmem [shape: bf16[2,3,256,2], index: 2, kind: input, shape index: {}, may-alias: {0,2}]
  %s3 = inlined_call_operand.vmem [shape: bf16[2,256,2], index: 3, kind: output, shape index: {}]
  %s4 = sld [smem:[#allocation0]]
  $region53: #{non_local_forward.4} parent=0
    _
  %s6 = ssub.s32 1, %s4
  %s7 = scalar_select 0, %s6, %s4
  loop: start=0, step=1, limit=10
  $region2: #{non_local_forward.4} parent=0 // loop_pre_header
    _
  $region3: #{non_local_forward.4} parent=0 // loop_header
    %s9 = sphi 0, %s13
    %p10 = scmp.ge.s32.totalorder %s9, 10
    %s16 = sphi 0, %s35
    %s17 = sphi 0, %s31
    %s18 = sphi 0, %s27
    %s19 = sphi 0, %s16
    %s20 = sphi 0, %s17
    %s21 = sphi 0, %s18
    %s22 = sphi 0, %s19
    %s23 = sphi 0, %s20
    %s24 = sphi 0, %s21
    %s40 = sphi 0, %s42
    %s43 = sphi 0, %s40
    %s44 = sphi 0, %s43
    %s60 = sphi 0, %s44
    %s68 = sphi 0, %s70
    %s71 = sphi 0, %s68
    %s72 = sphi 0, %s71
    %s88 = sphi 0, %s72
    %s96 = sphi 0, %s98
    %s99 = sphi 0, %s96
    %s100 = sphi 0, %s99
    %s116 = sphi 0, %s100
    %s124 = sphi 0, %s126
    %s127 = sphi 0, %s124
    %s128 = sphi 0, %s127
    %s144 = sphi 0, %s128
  $region4: #{non_local_forward.4} parent=0 // loop_header_branch
    %12 = sbr.rel (%p10) target = $region8
  $region5: #{non_local_forward.4} parent=0 // loop_body
    %s14 = ssub.s32 %s9, 1
    %s15 = ssub.s32 %s9, 2
    %s25 = sadd.s32 1, %s18
    %p26 = scmp.ge.s32.totalorder %s25, 2
    %s27 = scalar_select %p26, 0, %s25
    %s28 = sadd.s32 1, %s17
    %s29 = scalar_select %p26, %s28, %s17
    %p30 = scmp.ge.s32.totalorder %s29, 2
    %s31 = scalar_select %p30, 0, %s29
    %s32 = sadd.s32 1, %s16
    %s33 = scalar_select %p30, %s32, %s16
    %p34 = scmp.ge.s32.totalorder %s33, 2
    %s35 = scalar_select %p34, 0, %s33
    %s36 = ssub.s32 %s16, %s35
    %s37 = ssub.s32 %s17, %s31
    %s38 = sor.u32 %s36, %s37
    %p39 = scmp.eq.s32.totalorder %s38, 0
    %s41 = sadd.s32 %s40, 1
    %s42 = scalar_select %p39, %s40, %s41
    %p45 = pneg %p39
    %p46 = scmp.eq.s32.totalorder %s9, 7
    %p47 = por %p45, %p46
    %p48 = scmp.ne.s32.totalorder %s40, %s43
    %p49 = scmp.eq.s32.totalorder %s9, 0
    %p50 = por %p48, %p49
    %p51 = scmp.ne.s32.totalorder %s40, %s43
    %p52 = scmp.eq.s32.totalorder %s14, 7
    %p53 = por %p51, %p52
    %p54 = scmp.ne.s32.totalorder %s43, %s44
    %p55 = scmp.eq.s32.totalorder %s14, 0
    %p56 = por %p54, %p55
    %p57 = scmp.ne.s32.totalorder %s43, %s44
    %p58 = scmp.eq.s32.totalorder %s15, 7
    %p59 = por %p57, %p58
    %p61 = scmp.ne.s32.totalorder %s44, %s60
    %p62 = scmp.eq.s32.totalorder %s15, 0
    %p63 = por %p61, %p62
    %s64 = ssub.s32 %s16, %s35
    %s65 = ssub.s32 %s18, %s27
    %s66 = sor.u32 %s64, %s65
    %p67 = scmp.eq.s32.totalorder %s66, 0
    %s69 = sadd.s32 %s68, 1
    %s70 = scalar_select %p67, %s68, %s69
    %p73 = pneg %p67
    %p74 = scmp.eq.s32.totalorder %s9, 7
    %p75 = por %p73, %p74
    %p76 = scmp.ne.s32.totalorder %s68, %s71
    %p77 = scmp.eq.s32.totalorder %s9, 0
    %p78 = por %p76, %p77
    %p79 = scmp.ne.s32.totalorder %s68, %s71
    %p80 = scmp.eq.s32.totalorder %s14, 7
    %p81 = por %p79, %p80
    %p82 = scmp.ne.s32.totalorder %s71, %s72
    %p83 = scmp.eq.s32.totalorder %s14, 0
    %p84 = por %p82, %p83
    %p85 = scmp.ne.s32.totalorder %s71, %s72
    %p86 = scmp.eq.s32.totalorder %s15, 7
    %p87 = por %p85, %p86
    %p89 = scmp.ne.s32.totalorder %s72, %s88
    %p90 = scmp.eq.s32.totalorder %s15, 0
    %p91 = por %p89, %p90
    %s92 = ssub.s32 %s16, %s35
    %s93 = ssub.s32 %s18, %s27
    %s94 = sor.u32 %s92, %s93
    %p95 = scmp.eq.s32.totalorder %s94, 0
    %s97 = sadd.s32 %s96, 1
    %s98 = scalar_select %p95, %s96, %s97
    %p101 = pneg %p95
    %p102 = scmp.eq.s32.totalorder %s9, 7
    %p103 = por %p101, %p102
    %p104 = scmp.ne.s32.totalorder %s96, %s99
    %p105 = scmp.eq.s32.totalorder %s9, 0
    %p106 = por %p104, %p105
    %p107 = scmp.ne.s32.totalorder %s96, %s99
    %p108 = scmp.eq.s32.totalorder %s14, 7
    %p109 = por %p107, %p108
    %p110 = scmp.ne.s32.totalorder %s99, %s100
    %p111 = scmp.eq.s32.totalorder %s14, 0
    %p112 = por %p110, %p111
    %p113 = scmp.ne.s32.totalorder %s99, %s100
    %p114 = scmp.eq.s32.totalorder %s15, 7
    %p115 = por %p113, %p114
    %p117 = scmp.ne.s32.totalorder %s100, %s116
    %p118 = scmp.eq.s32.totalorder %s15, 0
    %p119 = por %p117, %p118
    %s120 = ssub.s32 %s16, %s35
    %s121 = ssub.s32 %s17, %s31
    %s122 = sor.u32 %s120, %s121
    %p123 = scmp.eq.s32.totalorder %s122, 0
    %s125 = sadd.s32 %s124, 1
    %s126 = scalar_select %p123, %s124, %s125
    %p129 = pneg %p123
    %p130 = scmp.eq.s32.totalorder %s9, 7
    %p131 = por %p129, %p130
    %p132 = scmp.ne.s32.totalorder %s124, %s127
    %p133 = scmp.eq.s32.totalorder %s9, 0
    %p134 = por %p132, %p133
    %p135 = scmp.ne.s32.totalorder %s124, %s127
    %p136 = scmp.eq.s32.totalorder %s14, 7
    %p137 = por %p135, %p136
    %p138 = scmp.ne.s32.totalorder %s127, %s128
    %p139 = scmp.eq.s32.totalorder %s14, 0
    %p140 = por %p138, %p139
    %p141 = scmp.ne.s32.totalorder %s127, %s128
    %p142 = scmp.eq.s32.totalorder %s15, 7
    %p143 = por %p141, %p142
    %p145 = scmp.ne.s32.totalorder %s128, %s144
    %p146 = scmp.eq.s32.totalorder %s15, 0
    %p147 = por %p145, %p146
    %p148 = scmp.le.s32.totalorder 1, %s9
    %p149 = scmp.lt.s32.totalorder %s9, 9
    %p150 = pnand %p148, %p149
    %p151 = pneg %p150
    // Predicated region
    $region9: #{non_local_forward.4} parent=5 // pred_check
      _
    $region10: #{non_local_forward.4} parent=5 // pred_check_branch
      %153 = sbr.rel (%p150) target = $region12
    $region11: #{non_local_forward.4} parent=5 // pred_region
      %s154 = ssub.s32 %s9, 1
    $region12: #{non_local_forward.4} parent=5 // pred_fallthru
      _
    %p155 = scmp.lt.s32.totalorder %s9, 8
    // Predicated region
    $region13: #{non_local_forward.4} parent=5 // pred_check
      %p156 = pneg %p155
    $region14: #{non_local_forward.4} parent=5 // pred_check_branch
      %158 = sbr.rel (%p156) target = $region16
    $region15: #{non_local_forward.4} parent=5 // pred_region
      // Predicated region
      $region17: #{non_local_forward.4} parent=15 // pred_check
        %p159 = pneg %p50
      $region18: #{non_local_forward.4} parent=15 // pred_check_branch
        %161 = sbr.rel (%p159) target = $region20
      $region19: #{non_local_forward.4} parent=15 // pred_region
        %s162 = smul.u32 16, %s17
        %p163 = scmp.lt.s32.totalorder %s16, 1
        %s164 = scalar_select %p163, %s16, 1
        %p165 = scmp.lt.s32.totalorder %s162, 31
        %s166 = scalar_select %p165, %s162, 31
        %s167 = smul.addr %s164, 96
        %s168 = sadd.s32 %s166, %s167
        %s169 = smul.addr %s168, 4
        %s170 = scalar_lea.vmem %s0, %s169
        %s171 = smul.u32 16, %s17
      $region20: #{non_local_forward.4} parent=15 // pred_fallthru
        _
      // Predicated region
      $region21: #{non_local_forward.4} parent=15 // pred_check
        %p172 = pneg %p78
      $region22: #{non_local_forward.4} parent=15 // pred_check_branch
        %174 = sbr.rel (%p172) target = $region24
      $region23: #{non_local_forward.4} parent=15 // pred_region
        %p175 = scmp.lt.s32.totalorder %s16, 1
        %s176 = scalar_select %p175, %s16, 1
        %p177 = scmp.lt.s32.totalorder %s18, 1
        %s178 = scalar_select %p177, %s18, 1
        %s179 = sadd.s32 %s178, 2
        %s180 = smul.addr %s176, 6
        %s181 = sadd.s32 %s179, %s180
        %s182 = scalar_lea.vmem %s1, %s181
      $region24: #{non_local_forward.4} parent=15 // pred_fallthru
        _
      // Predicated region
      $region25: #{non_local_forward.4} parent=15 // pred_check
        %p183 = pneg %p106
      $region26: #{non_local_forward.4} parent=15 // pred_check_branch
        %185 = sbr.rel (%p183) target = $region28
      $region27: #{non_local_forward.4} parent=15 // pred_region
        %s186 = smul.u32 16, %s18
        %p187 = scmp.lt.s32.totalorder %s16, 1
        %s188 = scalar_select %p187, %s16, 1
        %p189 = scmp.lt.s32.totalorder %s186, 31
        %s190 = scalar_select %p189, %s186, 31
        %s191 = sadd.s32 %s190, 64
        %s192 = smul.addr %s188, 96
        %s193 = sadd.s32 %s191, %s192
        %s194 = smul.addr %s193, 4
        %s195 = scalar_lea.vmem %s2, %s194
        %s196 = smul.u32 16, %s18
      $region28: #{non_local_forward.4} parent=15 // pred_fallthru
        _
    $region16: #{non_local_forward.4} parent=5 // pred_fallthru
      _
    %p197 = scmp.le.s32.totalorder 1, %s9
    %p198 = scmp.lt.s32.totalorder %s9, 9
    %p199 = pnand %p197, %p198
    %p200 = pneg %p199
    // Predicated region
    $region29: #{non_local_forward.4} parent=5 // pred_check
      _
    $region30: #{non_local_forward.4} parent=5 // pred_check_branch
      %202 = sbr.rel (%p199) target = $region32
    $region31: #{non_local_forward.4} parent=5 // pred_region
      %s203 = ssub.s32 %s9, 1
      %s204 = smul.u32 16, %s20
      %p205 = scmp.lt.s32.totalorder %s19, 1
      %s206 = scalar_select %p205, %s19, 1
      %p207 = scmp.lt.s32.totalorder %s204, 31
      %s208 = scalar_select %p207, %s204, 31
      %s209 = smul.addr %s206, 96
      %s210 = sadd.s32 %s208, %s209
      %s211 = smul.addr %s210, 4
      %s212 = scalar_lea.vmem %s0, %s211
      %p213 = pneg %p56
      %p214 = pneg %p53
      %p215 = scmp.lt.s32.totalorder %s19, 1
      %s216 = scalar_select %p215, %s19, 1
      %p217 = scmp.lt.s32.totalorder %s21, 1
      %s218 = scalar_select %p217, %s21, 1
      %s219 = sadd.s32 %s218, 2
      %s220 = smul.addr %s216, 6
      %s221 = sadd.s32 %s219, %s220
      %s222 = scalar_lea.vmem %s1, %s221
      %p223 = pneg %p84
      %p224 = pneg %p81
      %s225 = smul.u32 16, %s21
      %p226 = scmp.lt.s32.totalorder %s19, 1
      %s227 = scalar_select %p226, %s19, 1
      %p228 = scmp.lt.s32.totalorder %s225, 31
      %s229 = scalar_select %p228, %s225, 31
      %s230 = sadd.s32 %s229, 64
      %s231 = smul.addr %s227, 96
      %s232 = sadd.s32 %s230, %s231
      %s233 = smul.addr %s232, 4
      %s234 = scalar_lea.vmem %s2, %s233
      %p235 = pneg %p112
      %p236 = pneg %p109
      %p237 = pneg %p140
      %p238 = pneg %p137
      %s239 = smul.u32 16, %s20
      %p240 = scmp.lt.s32.totalorder %s19, 1
      %s241 = scalar_select %p240, %s19, 1
      %p242 = scmp.lt.s32.totalorder %s239, 31
      %s243 = scalar_select %p242, %s239, 31
      %s244 = smul.addr %s241, 32
      %s245 = sadd.s32 %s243, %s244
      %s246 = smul.addr %s245, 4
      %s247 = scalar_lea.vmem %s3, %s246
      %s248 = smul.u32 16, %s20
      %p249 = scmp.lt.s32.totalorder %s19, 1
      %s250 = scalar_select %p249, %s19, 1
      %p251 = scmp.lt.s32.totalorder %s248, 31
      %s252 = scalar_select %p251, %s248, 31
      %s253 = smul.addr %s250, 96
      %s254 = sadd.s32 %s252, %s253
      %s255 = smul.addr %s254, 4
      %s256 = scalar_lea.vmem %s0, %s255
      %s257 = smul.u32 16, %s20
      %p258 = scmp.lt.s32.totalorder %s19, 1
      %s259 = scalar_select %p258, %s19, 1
      %p260 = scmp.lt.s32.totalorder %s21, 1
      %s261 = scalar_select %p260, %s21, 1
      %s262 = sadd.s32 %s261, 2
      %s263 = smul.addr %s259, 6
      %s264 = sadd.s32 %s262, %s263
      %s265 = scalar_lea.vmem %s1, %s264
      %s266 = smul.u32 16, %s21
      %p267 = scmp.lt.s32.totalorder %s19, 1
      %s268 = scalar_select %p267, %s19, 1
      %p269 = scmp.lt.s32.totalorder %s266, 31
      %s270 = scalar_select %p269, %s266, 31
      %s271 = sadd.s32 %s270, 64
      %s272 = smul.addr %s268, 96
      %s273 = sadd.s32 %s271, %s272
      %s274 = smul.addr %s273, 4
      %s275 = scalar_lea.vmem %s2, %s274
      %s276 = smul.u32 16, %s21
      %s277 = smul.u32 16, %s20
      %p278 = scmp.lt.s32.totalorder %s19, 1
      %s279 = scalar_select %p278, %s19, 1
      %p280 = scmp.lt.s32.totalorder %s277, 31
      %s281 = scalar_select %p280, %s277, 31
      %s282 = smul.addr %s279, 32
      %s283 = sadd.s32 %s281, %s282
      %s284 = smul.addr %s283, 4
      %s285 = scalar_lea.vmem %s3, %s284
      %s286 = smul.u32 16, %s20
      %p288 = scmp.eq.s32.totalorder %s21, 0
      // Predicated region
      $region33: #{non_local_forward.4} parent=31 // pred_check
        %p289 = pneg %p288
      $region34: #{non_local_forward.4} parent=31 // pred_check_branch
        %291 = sbr.rel (%p289) target = $region36
      $region35: #{non_local_forward.4} parent=31 // pred_region
        %vm292 = vcmask 7168
        %293 = vst.msk [vmem:[#allocation2] sm:$0xff] %vm292, -inf
        %294 = vst.msk [vmem:[#allocation2 + $0x8] sm:$0xff] %vm292, -inf
        %295 = vst.msk [vmem:[#allocation2 + $0x10] sm:$0xff] %vm292, -inf
        %296 = vst.msk [vmem:[#allocation2 + $0x18] sm:$0xff] %vm292, -inf
        %297 = vst.msk [vmem:[#allocation2 + $0x20] sm:$0xff] %vm292, -inf
        %298 = vst.msk [vmem:[#allocation2 + $0x28] sm:$0xff] %vm292, -inf
        %299 = vst.msk [vmem:[#allocation2 + $0x30] sm:$0xff] %vm292, -inf
        %300 = vst.msk [vmem:[#allocation2 + $0x38] sm:$0xff] %vm292, -inf
        %301 = vst.msk [vmem:[#allocation2 + $0x40] sm:$0xff] %vm292, -inf
        %302 = vst.msk [vmem:[#allocation2 + $0x48] sm:$0xff] %vm292, -inf
        %303 = vst.msk [vmem:[#allocation2 + $0x50] sm:$0xff] %vm292, -inf
        %304 = vst.msk [vmem:[#allocation2 + $0x58] sm:$0xff] %vm292, -inf
        %305 = vst.msk [vmem:[#allocation2 + $0x60] sm:$0xff] %vm292, -inf
        %306 = vst.msk [vmem:[#allocation2 + $0x68] sm:$0xff] %vm292, -inf
        %307 = vst.msk [vmem:[#allocation2 + $0x70] sm:$0xff] %vm292, -inf
        %308 = vst.msk [vmem:[#allocation2 + $0x78] sm:$0xff] %vm292, -inf
        %309 = vst.msk [vmem:[#allocation3] sm:$0xff] %vm292, 0.0
        %310 = vst.msk [vmem:[#allocation3 + $0x8] sm:$0xff] %vm292, 0.0
        %311 = vst.msk [vmem:[#allocation3 + $0x10] sm:$0xff] %vm292, 0.0
        %312 = vst.msk [vmem:[#allocation3 + $0x18] sm:$0xff] %vm292, 0.0
        %313 = vst.msk [vmem:[#allocation3 + $0x20] sm:$0xff] %vm292, 0.0
        %314 = vst.msk [vmem:[#allocation3 + $0x28] sm:$0xff] %vm292, 0.0
        %315 = vst.msk [vmem:[#allocation3 + $0x30] sm:$0xff] %vm292, 0.0
        %316 = vst.msk [vmem:[#allocation3 + $0x38] sm:$0xff] %vm292, 0.0
        %317 = vst.msk [vmem:[#allocation3 + $0x40] sm:$0xff] %vm292, 0.0
        %318 = vst.msk [vmem:[#allocation3 + $0x48] sm:$0xff] %vm292, 0.0
        %319 = vst.msk [vmem:[#allocation3 + $0x50] sm:$0xff] %vm292, 0.0
        %320 = vst.msk [vmem:[#allocation3 + $0x58] sm:$0xff] %vm292, 0.0
        %321 = vst.msk [vmem:[#allocation3 + $0x60] sm:$0xff] %vm292, 0.0
        %322 = vst.msk [vmem:[#allocation3 + $0x68] sm:$0xff] %vm292, 0.0
        %323 = vst.msk [vmem:[#allocation3 + $0x70] sm:$0xff] %vm292, 0.0
        %324 = vst.msk [vmem:[#allocation3 + $0x78] sm:$0xff] %vm292, 0.0
        %vm325 = vcmask 15360
        %326 = vst.msk [vmem:[#allocation4] sm:$0xff] %vm325, 0.0
        %327 = vst.msk [vmem:[#allocation4 + $0x8] sm:$0xff] %vm325, 0.0
        %328 = vst.msk [vmem:[#allocation4 + $0x10] sm:$0xff] %vm325, 0.0
        %329 = vst.msk [vmem:[#allocation4 + $0x18] sm:$0xff] %vm325, 0.0
        %330 = vst.msk [vmem:[#allocation4 + $0x20] sm:$0xff] %vm325, 0.0
        %331 = vst.msk [vmem:[#allocation4 + $0x28] sm:$0xff] %vm325, 0.0
        %332 = vst.msk [vmem:[#allocation4 + $0x30] sm:$0xff] %vm325, 0.0
        %333 = vst.msk [vmem:[#allocation4 + $0x38] sm:$0xff] %vm325, 0.0
        %334 = vst.msk [vmem:[#allocation4 + $0x40] sm:$0xff] %vm325, 0.0
        %335 = vst.msk [vmem:[#allocation4 + $0x48] sm:$0xff] %vm325, 0.0
        %336 = vst.msk [vmem:[#allocation4 + $0x50] sm:$0xff] %vm325, 0.0
        %337 = vst.msk [vmem:[#allocation4 + $0x58] sm:$0xff] %vm325, 0.0
        %338 = vst.msk [vmem:[#allocation4 + $0x60] sm:$0xff] %vm325, 0.0
        %339 = vst.msk [vmem:[#allocation4 + $0x68] sm:$0xff] %vm325, 0.0
        %340 = vst.msk [vmem:[#allocation4 + $0x70] sm:$0xff] %vm325, 0.0
        %341 = vst.msk [vmem:[#allocation4 + $0x78] sm:$0xff] %vm325, 0.0
      $region36: #{non_local_forward.4} parent=31 // pred_fallthru
        _
      %v342 = vld [vmem:[%s256] sm:$0xf]
      %v343 = vld [vmem:[%s256 + $0x4] sm:$0xf]
      %v344 = vld [vmem:[%s256 + $0x8] sm:$0xf]
      %v345 = vld [vmem:[%s256 + $0xc] sm:$0xf]
      %v346 = vld [vmem:[%s256 + $0x10] sm:$0xf]
      %v347 = vld [vmem:[%s256 + $0x14] sm:$0xf]
      %v348 = vld [vmem:[%s256 + $0x18] sm:$0xf]
      %v349 = vld [vmem:[%s256 + $0x1c] sm:$0xf]
      %v350 = vld [vmem:[%s256 + $0x20] sm:$0xf]
      %v351 = vld [vmem:[%s256 + $0x24] sm:$0xf]
      %v352 = vld [vmem:[%s256 + $0x28] sm:$0xf]
      %v353 = vld [vmem:[%s256 + $0x2c] sm:$0xf]
      %v354 = vld [vmem:[%s256 + $0x30] sm:$0xf]
      %v355 = vld [vmem:[%s256 + $0x34] sm:$0xf]
      %v356 = vld [vmem:[%s256 + $0x38] sm:$0xf]
      %v357 = vld [vmem:[%s256 + $0x3c] sm:$0xf]
      %v358 = vld [vmem:[%s265] sm:$0x1]
      %v359 = vld [vmem:[%s275] sm:$0xf]
      %v360 = vld [vmem:[%s275 + $0x4] sm:$0xf]
      %v361 = vld [vmem:[%s275 + $0x8] sm:$0xf]
      %v362 = vld [vmem:[%s275 + $0xc] sm:$0xf]
      %v363 = vld [vmem:[%s275 + $0x10] sm:$0xf]
      %v364 = vld [vmem:[%s275 + $0x14] sm:$0xf]
      %v365 = vld [vmem:[%s275 + $0x18] sm:$0xf]
      %v366 = vld [vmem:[%s275 + $0x1c] sm:$0xf]
      %v367 = vld [vmem:[%s275 + $0x20] sm:$0xf]
      %v368 = vld [vmem:[%s275 + $0x24] sm:$0xf]
      %v369 = vld [vmem:[%s275 + $0x28] sm:$0xf]
      %v370 = vld [vmem:[%s275 + $0x2c] sm:$0xf]
      %v371 = vld [vmem:[%s275 + $0x30] sm:$0xf]
      %v372 = vld [vmem:[%s275 + $0x34] sm:$0xf]
      %v373 = vld [vmem:[%s275 + $0x38] sm:$0xf]
      %v374 = vld [vmem:[%s275 + $0x3c] sm:$0xf]
      %v391 = vunpack.c.l.b16 %v342
      %v392 = vunpack.c.l.b16 %v343
      %v393 = vunpack.c.l.b16 %v344
      %v394 = vunpack.c.l.b16 %v345
      %v395 = vunpack.c.l.b16 %v346
      %v396 = vunpack.c.l.b16 %v347
      %v397 = vunpack.c.l.b16 %v348
      %v398 = vunpack.c.l.b16 %v349
      %v399 = vunpack.c.l.b16 %v350
      %v400 = vunpack.c.l.b16 %v351
      %v401 = vunpack.c.l.b16 %v352
      %v402 = vunpack.c.l.b16 %v353
      %v403 = vunpack.c.l.b16 %v354
      %v404 = vunpack.c.l.b16 %v355
      %v405 = vunpack.c.l.b16 %v356
      %v406 = vunpack.c.l.b16 %v357
      %v407 = vpack.c.b16 %v392, %v391
      %v408 = vpack.c.b16 %v394, %v393
      %v409 = vpack.c.b16 %v396, %v395
      %v410 = vpack.c.b16 %v398, %v397
      %v411 = vpack.c.b16 %v400, %v399
      %v412 = vpack.c.b16 %v402, %v401
      %v413 = vpack.c.b16 %v404, %v403
      %v414 = vpack.c.b16 %v406, %v405
      %vm415 = vcmask 15360
      %v417 = vsel %vm415, %v407, 0
      %v420 = vsel %vm415, %v408, 0
      %v423 = vsel %vm415, %v409, 0
      %v426 = vsel %vm415, %v410, 0
      %v429 = vsel %vm415, %v411, 0
      %v432 = vsel %vm415, %v412, 0
      %v435 = vsel %vm415, %v413, 0
      %v438 = vsel %vm415, %v414, 0
      %vm440 = vcmask 1040384
      %v442 = vsel %vm440, %v358, 0
      %444 = vmatprep.subr.bf16.mxu0 0
      %445 = vmatpush1.bf16.msra.mxu0 0
      %446 = vmatprep.subr.bf16.mxu0 0
      %447 = vmatpush1.bf16.msra.mxu0 0
      %448 = vmatprep.subr.bf16.mxu0 0
      %449 = vmatpush1.bf16.msra.mxu0 0
      %450 = vmatprep.subr.bf16.mxu0 0
      %451 = vmatpush1.bf16.msra.mxu0 0
      %452 = vmatprep.subr.bf16.mxu0 0
      %453 = vmatpush1.bf16.msra.mxu0 0
      %454 = vmatprep.subr.bf16.mxu0 0
      %455 = vmatpush1.bf16.msra.mxu0 0
      %456 = vmatprep.subr.bf16.mxu0 0
      %457 = vmatpush1.bf16.msra.mxu0 0
      %458 = vmatprep.subr.bf16.mxu0 0
      %459 = vmatpush1.bf16.msra.mxu0 %v442
      %460 = vmatprep.subr.bf16.mxu0 0
      %461 = vmatpush2.bf16.msra.mxu0 0
      %462 = vmatprep.subr.bf16.mxu0 0
      %463 = vmatpush2.bf16.msra.mxu0 0
      %464 = vmatprep.subr.bf16.mxu0 0
      %465 = vmatpush2.bf16.msra.mxu0 0
      %466 = vmatprep.subr.bf16.mxu0 0
      %467 = vmatpush2.bf16.msra.mxu0 0
      %468 = vmatprep.subr.bf16.mxu0 0
      %469 = vmatpush2.bf16.msra.mxu0 0
      %470 = vmatprep.subr.bf16.mxu0 0
      %471 = vmatpush2.bf16.msra.mxu0 0
      %472 = vmatprep.subr.bf16.mxu0 0
      %473 = vmatpush2.bf16.msra.mxu0 0
      %474 = vmatprep.subr.bf16.mxu0 0
      %475 = vmatpush2.bf16.msra.mxu0 0
      %476 = vmatprep.mubr.bf16.mxu0 0
      %477 = vmatmul.mubr.bf16.gmra.mxu0 %v417
      %v478 = vpop.f32.mrf.mxu0
      %v479 = vadd.f32 0.0, %v478
      %v480 = vpop.f32.mrf.mxu0
      %v481 = vpop.f32.mrf.mxu0
      %v482 = vadd.f32 0.0, %v481
      %v483 = vpop.f32.mrf.mxu0
      %484 = vmatprep.mubr.bf16.mxu0 0
      %485 = vmatmul.mubr.bf16.gmra.mxu0 %v420
      %v486 = vpop.f32.mrf.mxu0
      %v487 = vadd.f32 0.0, %v486
      %v488 = vpop.f32.mrf.mxu0
      %v489 = vpop.f32.mrf.mxu0
      %v490 = vadd.f32 0.0, %v489
      %v491 = vpop.f32.mrf.mxu0
      %492 = vmatprep.mubr.bf16.mxu0 0
      %493 = vmatmul.mubr.bf16.gmra.mxu0 %v423
      %v494 = vpop.f32.mrf.mxu0
      %v495 = vadd.f32 0.0, %v494
      %v496 = vpop.f32.mrf.mxu0
      %v497 = vpop.f32.mrf.mxu0
      %v498 = vadd.f32 0.0, %v497
      %v499 = vpop.f32.mrf.mxu0
      %500 = vmatprep.mubr.bf16.mxu0 0
      %501 = vmatmul.mubr.bf16.gmra.mxu0 %v426
      %v502 = vpop.f32.mrf.mxu0
      %v503 = vadd.f32 0.0, %v502
      %v504 = vpop.f32.mrf.mxu0
      %v505 = vpop.f32.mrf.mxu0
      %v506 = vadd.f32 0.0, %v505
      %v507 = vpop.f32.mrf.mxu0
      %508 = vmatprep.mubr.bf16.mxu0 0
      %509 = vmatmul.mubr.bf16.gmra.mxu0 %v429
      %v510 = vpop.f32.mrf.mxu0
      %v511 = vadd.f32 0.0, %v510
      %v512 = vpop.f32.mrf.mxu0
      %v513 = vpop.f32.mrf.mxu0
      %v514 = vadd.f32 0.0, %v513
      %v515 = vpop.f32.mrf.mxu0
      %516 = vmatprep.mubr.bf16.mxu0 0
      %517 = vmatmul.mubr.bf16.gmra.mxu0 %v432
      %v518 = vpop.f32.mrf.mxu0
      %v519 = vadd.f32 0.0, %v518
      %v520 = vpop.f32.mrf.mxu0
      %v521 = vpop.f32.mrf.mxu0
      %v522 = vadd.f32 0.0, %v521
      %v523 = vpop.f32.mrf.mxu0
      %524 = vmatprep.mubr.bf16.mxu0 0
      %525 = vmatmul.mubr.bf16.gmra.mxu0 %v435
      %v526 = vpop.f32.mrf.mxu0
      %v527 = vadd.f32 0.0, %v526
      %v528 = vpop.f32.mrf.mxu0
      %v529 = vpop.f32.mrf.mxu0
      %v530 = vadd.f32 0.0, %v529
      %v531 = vpop.f32.mrf.mxu0
      %532 = vmatprep.mubr.bf16.mxu0 0
      %533 = vmatmul.mubr.bf16.gmra.mxu0 %v438
      %v534 = vpop.f32.mrf.mxu0
      %v535 = vadd.f32 0.0, %v534
      %v536 = vpop.f32.mrf.mxu0
      %v537 = vpop.f32.mrf.mxu0
      %v538 = vadd.f32 0.0, %v537
      %v539 = vpop.f32.mrf.mxu0
      %540 = vdwg.mxu0
      %v541 = vld [vmem:[#allocation2] sm:$0xff]
      %v542 = vld [vmem:[#allocation2 + $0x8] sm:$0xff]
      %v543 = vld [vmem:[#allocation2 + $0x10] sm:$0xff]
      %v544 = vld [vmem:[#allocation2 + $0x18] sm:$0xff]
      %v545 = vld [vmem:[#allocation2 + $0x20] sm:$0xff]
      %v546 = vld [vmem:[#allocation2 + $0x28] sm:$0xff]
      %v547 = vld [vmem:[#allocation2 + $0x30] sm:$0xff]
      %v548 = vld [vmem:[#allocation2 + $0x38] sm:$0xff]
      %v549 = vld [vmem:[#allocation2 + $0x40] sm:$0xff]
      %v550 = vld [vmem:[#allocation2 + $0x48] sm:$0xff]
      %v551 = vld [vmem:[#allocation2 + $0x50] sm:$0xff]
      %v552 = vld [vmem:[#allocation2 + $0x58] sm:$0xff]
      %v553 = vld [vmem:[#allocation2 + $0x60] sm:$0xff]
      %v554 = vld [vmem:[#allocation2 + $0x68] sm:$0xff]
      %v555 = vld [vmem:[#allocation2 + $0x70] sm:$0xff]
      %v556 = vld [vmem:[#allocation2 + $0x78] sm:$0xff]
      %557 = vmax.xlane.f32.xlu0 %v479
      %v558 = vpop.xlane.xlu0 %557
      %559 = vmax.xlane.f32.xlu0 %v482
      %v560 = vpop.xlane.xlu0 %559
      %561 = vmax.xlane.f32.xlu0 %v487
      %v562 = vpop.xlane.xlu0 %561
      %563 = vmax.xlane.f32.xlu0 %v490
      %v564 = vpop.xlane.xlu0 %563
      %565 = vmax.xlane.f32.xlu0 %v495
      %v566 = vpop.xlane.xlu0 %565
      %567 = vmax.xlane.f32.xlu0 %v498
      %v568 = vpop.xlane.xlu0 %567
      %569 = vmax.xlane.f32.xlu0 %v503
      %v570 = vpop.xlane.xlu0 %569
      %571 = vmax.xlane.f32.xlu0 %v506
      %v572 = vpop.xlane.xlu0 %571
      %573 = vmax.xlane.f32.xlu0 %v511
      %v574 = vpop.xlane.xlu0 %573
      %575 = vmax.xlane.f32.xlu0 %v514
      %v576 = vpop.xlane.xlu0 %575
      %577 = vmax.xlane.f32.xlu0 %v519
      %v578 = vpop.xlane.xlu0 %577
      %579 = vmax.xlane.f32.xlu0 %v522
      %v580 = vpop.xlane.xlu0 %579
      %581 = vmax.xlane.f32.xlu0 %v527
      %v582 = vpop.xlane.xlu0 %581
      %583 = vmax.xlane.f32.xlu0 %v530
      %v584 = vpop.xlane.xlu0 %583
      %585 = vmax.xlane.f32.xlu0 %v535
      %v586 = vpop.xlane.xlu0 %585
      %587 = vmax.xlane.f32.xlu0 %v538
      %v588 = vpop.xlane.xlu0 %587
      %v589 = vmax.f32 %v541, %v558
      %v590 = vmax.f32 %v542, %v560
      %v591 = vmax.f32 %v543, %v562
      %v592 = vmax.f32 %v544, %v564
      %v593 = vmax.f32 %v545, %v566
      %v594 = vmax.f32 %v546, %v568
      %v595 = vmax.f32 %v547, %v570
      %v596 = vmax.f32 %v548, %v572
      %v597 = vmax.f32 %v549, %v574
      %v598 = vmax.f32 %v550, %v576
      %v599 = vmax.f32 %v551, %v578
      %v600 = vmax.f32 %v552, %v580
      %v601 = vmax.f32 %v553, %v582
      %v602 = vmax.f32 %v554, %v584
      %v603 = vmax.f32 %v555, %v586
      %v604 = vmax.f32 %v556, %v588
      %v605 = vsub.f32 %v541, %v589
      %v606 = vsub.f32 %v542, %v590
      %v607 = vsub.f32 %v543, %v591
      %v608 = vsub.f32 %v544, %v592
      %v609 = vsub.f32 %v545, %v593
      %v610 = vsub.f32 %v546, %v594
      %v611 = vsub.f32 %v547, %v595
      %v612 = vsub.f32 %v548, %v596
      %v613 = vsub.f32 %v549, %v597
      %v614 = vsub.f32 %v550, %v598
      %v615 = vsub.f32 %v551, %v599
      %v616 = vsub.f32 %v552, %v600
      %v617 = vsub.f32 %v553, %v601
      %v618 = vsub.f32 %v554, %v602
      %v619 = vsub.f32 %v555, %v603
      %v620 = vsub.f32 %v556, %v604
      %v621 = vmul.f32 %v605, 1.442695
      %v622 = vpow.pop %v621
      %v623 = vmul.f32 %v606, 1.442695
      %v624 = vpow.pop %v623
      %v625 = vmul.f32 %v607, 1.442695
      %v626 = vpow.pop %v625
      %v627 = vmul.f32 %v608, 1.442695
      %v628 = vpow.pop %v627
      %v629 = vmul.f32 %v609, 1.442695
      %v630 = vpow.pop %v629
      %v631 = vmul.f32 %v610, 1.442695
      %v632 = vpow.pop %v631
      %v633 = vmul.f32 %v611, 1.442695
      %v634 = vpow.pop %v633
      %v635 = vmul.f32 %v612, 1.442695
      %v636 = vpow.pop %v635
      %v637 = vmul.f32 %v613, 1.442695
      %v638 = vpow.pop %v637
      %v639 = vmul.f32 %v614, 1.442695
      %v640 = vpow.pop %v639
      %v641 = vmul.f32 %v615, 1.442695
      %v642 = vpow.pop %v641
      %v643 = vmul.f32 %v616, 1.442695
      %v644 = vpow.pop %v643
      %v645 = vmul.f32 %v617, 1.442695
      %v646 = vpow.pop %v645
      %v647 = vmul.f32 %v618, 1.442695
      %v648 = vpow.pop %v647
      %v649 = vmul.f32 %v619, 1.442695
      %v650 = vpow.pop %v649
      %v651 = vmul.f32 %v620, 1.442695
      %v652 = vpow.pop %v651
      %654 = vset.pattern.permute.xlu0 0
      %655 = vperm.xlu0 %654, %v589
      %v656 = vpop.permute.xlu0 %655
      %659 = vset.pattern.permute.xlu0 0
      %660 = vperm.xlu0 %659, %v590
      %v661 = vpop.permute.xlu0 %660
      %664 = vset.pattern.permute.xlu0 0
      %665 = vperm.xlu0 %664, %v591
      %v666 = vpop.permute.xlu0 %665
      %669 = vset.pattern.permute.xlu0 0
      %670 = vperm.xlu0 %669, %v592
      %v671 = vpop.permute.xlu0 %670
      %674 = vset.pattern.permute.xlu0 0
      %675 = vperm.xlu0 %674, %v593
      %v676 = vpop.permute.xlu0 %675
      %679 = vset.pattern.permute.xlu0 0
      %680 = vperm.xlu0 %679, %v594
      %v681 = vpop.permute.xlu0 %680
      %684 = vset.pattern.permute.xlu0 0
      %685 = vperm.xlu0 %684, %v595
      %v686 = vpop.permute.xlu0 %685
      %689 = vset.pattern.permute.xlu0 0
      %690 = vperm.xlu0 %689, %v596
      %v691 = vpop.permute.xlu0 %690
      %694 = vset.pattern.permute.xlu0 0
      %695 = vperm.xlu0 %694, %v597
      %v696 = vpop.permute.xlu0 %695
      %699 = vset.pattern.permute.xlu0 0
      %700 = vperm.xlu0 %699, %v598
      %v701 = vpop.permute.xlu0 %700
      %704 = vset.pattern.permute.xlu0 0
      %705 = vperm.xlu0 %704, %v599
      %v706 = vpop.permute.xlu0 %705
      %709 = vset.pattern.permute.xlu0 0
      %710 = vperm.xlu0 %709, %v600
      %v711 = vpop.permute.xlu0 %710
      %714 = vset.pattern.permute.xlu0 0
      %715 = vperm.xlu0 %714, %v601
      %v716 = vpop.permute.xlu0 %715
      %719 = vset.pattern.permute.xlu0 0
      %720 = vperm.xlu0 %719, %v602
      %v721 = vpop.permute.xlu0 %720
      %724 = vset.pattern.permute.xlu0 0
      %725 = vperm.xlu0 %724, %v603
      %v726 = vpop.permute.xlu0 %725
      %729 = vset.pattern.permute.xlu0 0
      %730 = vperm.xlu0 %729, %v604
      %v731 = vpop.permute.xlu0 %730
      %v733 = vsub.f32 %v479, %v656
      %v734 = vsub.f32 %v482, %v661
      %v735 = vsub.f32 %v487, %v666
      %v736 = vsub.f32 %v490, %v671
      %v737 = vsub.f32 %v495, %v676
      %v738 = vsub.f32 %v498, %v681
      %v739 = vsub.f32 %v503, %v686
      %v740 = vsub.f32 %v506, %v691
      %v741 = vsub.f32 %v511, %v696
      %v742 = vsub.f32 %v514, %v701
      %v743 = vsub.f32 %v519, %v706
      %v744 = vsub.f32 %v522, %v711
      %v745 = vsub.f32 %v527, %v716
      %v746 = vsub.f32 %v530, %v721
      %v747 = vsub.f32 %v535, %v726
      %v748 = vsub.f32 %v538, %v731
      %v749 = vmul.f32 %v733, 1.442695
      %v750 = vpow.pop %v749
      %v751 = vmul.f32 %v734, 1.442695
      %v752 = vpow.pop %v751
      %v753 = vmul.f32 %v735, 1.442695
      %v754 = vpow.pop %v753
      %v755 = vmul.f32 %v736, 1.442695
      %v756 = vpow.pop %v755
      %v757 = vmul.f32 %v737, 1.442695
      %v758 = vpow.pop %v757
      %v759 = vmul.f32 %v738, 1.442695
      %v760 = vpow.pop %v759
      %v761 = vmul.f32 %v739, 1.442695
      %v762 = vpow.pop %v761
      %v763 = vmul.f32 %v740, 1.442695
      %v764 = vpow.pop %v763
      %v765 = vmul.f32 %v741, 1.442695
      %v766 = vpow.pop %v765
      %v767 = vmul.f32 %v742, 1.442695
      %v768 = vpow.pop %v767
      %v769 = vmul.f32 %v743, 1.442695
      %v770 = vpow.pop %v769
      %v771 = vmul.f32 %v744, 1.442695
      %v772 = vpow.pop %v771
      %v773 = vmul.f32 %v745, 1.442695
      %v774 = vpow.pop %v773
      %v775 = vmul.f32 %v746, 1.442695
      %v776 = vpow.pop %v775
      %v777 = vmul.f32 %v747, 1.442695
      %v778 = vpow.pop %v777
      %v779 = vmul.f32 %v748, 1.442695
      %v780 = vpow.pop %v779
      %v781 = vld [vmem:[#allocation3] sm:$0xff]
      %v782 = vld [vmem:[#allocation3 + $0x8] sm:$0xff]
      %v783 = vld [vmem:[#allocation3 + $0x10] sm:$0xff]
      %v784 = vld [vmem:[#allocation3 + $0x18] sm:$0xff]
      %v785 = vld [vmem:[#allocation3 + $0x20] sm:$0xff]
      %v786 = vld [vmem:[#allocation3 + $0x28] sm:$0xff]
      %v787 = vld [vmem:[#allocation3 + $0x30] sm:$0xff]
      %v788 = vld [vmem:[#allocation3 + $0x38] sm:$0xff]
      %v789 = vld [vmem:[#allocation3 + $0x40] sm:$0xff]
      %v790 = vld [vmem:[#allocation3 + $0x48] sm:$0xff]
      %v791 = vld [vmem:[#allocation3 + $0x50] sm:$0xff]
      %v792 = vld [vmem:[#allocation3 + $0x58] sm:$0xff]
      %v793 = vld [vmem:[#allocation3 + $0x60] sm:$0xff]
      %v794 = vld [vmem:[#allocation3 + $0x68] sm:$0xff]
      %v795 = vld [vmem:[#allocation3 + $0x70] sm:$0xff]
      %v796 = vld [vmem:[#allocation3 + $0x78] sm:$0xff]
      %v797 = vmul.f32 %v622, %v781
      %v798 = vmul.f32 %v624, %v782
      %v799 = vmul.f32 %v626, %v783
      %v800 = vmul.f32 %v628, %v784
      %v801 = vmul.f32 %v630, %v785
      %v802 = vmul.f32 %v632, %v786
      %v803 = vmul.f32 %v634, %v787
      %v804 = vmul.f32 %v636, %v788
      %v805 = vmul.f32 %v638, %v789
      %v806 = vmul.f32 %v640, %v790
      %v807 = vmul.f32 %v642, %v791
      %v808 = vmul.f32 %v644, %v792
      %v809 = vmul.f32 %v646, %v793
      %v810 = vmul.f32 %v648, %v794
      %v811 = vmul.f32 %v650, %v795
      %v812 = vmul.f32 %v652, %v796
      %813 = vadd.xlane.f32.xlu0 %v750
      %v814 = vpop.xlane.xlu0 %813
      %815 = vadd.xlane.f32.xlu0 %v752
      %v816 = vpop.xlane.xlu0 %815
      %817 = vadd.xlane.f32.xlu0 %v754
      %v818 = vpop.xlane.xlu0 %817
      %819 = vadd.xlane.f32.xlu0 %v756
      %v820 = vpop.xlane.xlu0 %819
      %821 = vadd.xlane.f32.xlu0 %v758
      %v822 = vpop.xlane.xlu0 %821
      %823 = vadd.xlane.f32.xlu0 %v760
      %v824 = vpop.xlane.xlu0 %823
      %825 = vadd.xlane.f32.xlu0 %v762
      %v826 = vpop.xlane.xlu0 %825
      %827 = vadd.xlane.f32.xlu0 %v764
      %v828 = vpop.xlane.xlu0 %827
      %829 = vadd.xlane.f32.xlu0 %v766
      %v830 = vpop.xlane.xlu0 %829
      %831 = vadd.xlane.f32.xlu0 %v768
      %v832 = vpop.xlane.xlu0 %831
      %833 = vadd.xlane.f32.xlu0 %v770
      %v834 = vpop.xlane.xlu0 %833
      %835 = vadd.xlane.f32.xlu0 %v772
      %v836 = vpop.xlane.xlu0 %835
      %837 = vadd.xlane.f32.xlu0 %v774
      %v838 = vpop.xlane.xlu0 %837
      %839 = vadd.xlane.f32.xlu0 %v776
      %v840 = vpop.xlane.xlu0 %839
      %841 = vadd.xlane.f32.xlu0 %v778
      %v842 = vpop.xlane.xlu0 %841
      %843 = vadd.xlane.f32.xlu0 %v780
      %v844 = vpop.xlane.xlu0 %843
      %v845 = vadd.f32 %v797, %v814
      %v846 = vadd.f32 %v798, %v816
      %v847 = vadd.f32 %v799, %v818
      %v848 = vadd.f32 %v800, %v820
      %v849 = vadd.f32 %v801, %v822
      %v850 = vadd.f32 %v802, %v824
      %v851 = vadd.f32 %v803, %v826
      %v852 = vadd.f32 %v804, %v828
      %v853 = vadd.f32 %v805, %v830
      %v854 = vadd.f32 %v806, %v832
      %v855 = vadd.f32 %v807, %v834
      %v856 = vadd.f32 %v808, %v836
      %v857 = vadd.f32 %v809, %v838
      %v858 = vadd.f32 %v810, %v840
      %v859 = vadd.f32 %v811, %v842
      %v860 = vadd.f32 %v812, %v844
      %vm861 = vcmask 7168
      %862 = vst.msk [vmem:[#allocation3] sm:$0xff] %vm861, %v845
      %863 = vst.msk [vmem:[#allocation3 + $0x8] sm:$0xff] %vm861, %v846
      %864 = vst.msk [vmem:[#allocation3 + $0x10] sm:$0xff] %vm861, %v847
      %865 = vst.msk [vmem:[#allocation3 + $0x18] sm:$0xff] %vm861, %v848
      %866 = vst.msk [vmem:[#allocation3 + $0x20] sm:$0xff] %vm861, %v849
      %867 = vst.msk [vmem:[#allocation3 + $0x28] sm:$0xff] %vm861, %v850
      %868 = vst.msk [vmem:[#allocation3 + $0x30] sm:$0xff] %vm861, %v851
      %869 = vst.msk [vmem:[#allocation3 + $0x38] sm:$0xff] %vm861, %v852
      %870 = vst.msk [vmem:[#allocation3 + $0x40] sm:$0xff] %vm861, %v853
      %871 = vst.msk [vmem:[#allocation3 + $0x48] sm:$0xff] %vm861, %v854
      %872 = vst.msk [vmem:[#allocation3 + $0x50] sm:$0xff] %vm861, %v855
      %873 = vst.msk [vmem:[#allocation3 + $0x58] sm:$0xff] %vm861, %v856
      %874 = vst.msk [vmem:[#allocation3 + $0x60] sm:$0xff] %vm861, %v857
      %875 = vst.msk [vmem:[#allocation3 + $0x68] sm:$0xff] %vm861, %v858
      %876 = vst.msk [vmem:[#allocation3 + $0x70] sm:$0xff] %vm861, %v859
      %877 = vst.msk [vmem:[#allocation3 + $0x78] sm:$0xff] %vm861, %v860
      %v878 = vld [vmem:[#allocation4] sm:$0xff]
      %v879 = vld [vmem:[#allocation4 + $0x8] sm:$0xff]
      %v880 = vld [vmem:[#allocation4 + $0x10] sm:$0xff]
      %v881 = vld [vmem:[#allocation4 + $0x18] sm:$0xff]
      %v882 = vld [vmem:[#allocation4 + $0x20] sm:$0xff]
      %v883 = vld [vmem:[#allocation4 + $0x28] sm:$0xff]
      %v884 = vld [vmem:[#allocation4 + $0x30] sm:$0xff]
      %v885 = vld [vmem:[#allocation4 + $0x38] sm:$0xff]
      %v886 = vld [vmem:[#allocation4 + $0x40] sm:$0xff]
      %v887 = vld [vmem:[#allocation4 + $0x48] sm:$0xff]
      %v888 = vld [vmem:[#allocation4 + $0x50] sm:$0xff]
      %v889 = vld [vmem:[#allocation4 + $0x58] sm:$0xff]
      %v890 = vld [vmem:[#allocation4 + $0x60] sm:$0xff]
      %v891 = vld [vmem:[#allocation4 + $0x68] sm:$0xff]
      %v892 = vld [vmem:[#allocation4 + $0x70] sm:$0xff]
      %v893 = vld [vmem:[#allocation4 + $0x78] sm:$0xff]
      %895 = vset.pattern.permute.xlu0 0
      %896 = vperm.xlu0 %895, %v622
      %v897 = vpop.permute.xlu0 %896
      %900 = vset.pattern.permute.xlu0 0
      %901 = vperm.xlu0 %900, %v624
      %v902 = vpop.permute.xlu0 %901
      %905 = vset.pattern.permute.xlu0 0
      %906 = vperm.xlu0 %905, %v626
      %v907 = vpop.permute.xlu0 %906
      %910 = vset.pattern.permute.xlu0 0
      %911 = vperm.xlu0 %910, %v628
      %v912 = vpop.permute.xlu0 %911
      %915 = vset.pattern.permute.xlu0 0
      %916 = vperm.xlu0 %915, %v630
      %v917 = vpop.permute.xlu0 %916
      %920 = vset.pattern.permute.xlu0 0
      %921 = vperm.xlu0 %920, %v632
      %v922 = vpop.permute.xlu0 %921
      %925 = vset.pattern.permute.xlu0 0
      %926 = vperm.xlu0 %925, %v634
      %v927 = vpop.permute.xlu0 %926
      %930 = vset.pattern.permute.xlu0 0
      %931 = vperm.xlu0 %930, %v636
      %v932 = vpop.permute.xlu0 %931
      %935 = vset.pattern.permute.xlu0 0
      %936 = vperm.xlu0 %935, %v638
      %v937 = vpop.permute.xlu0 %936
      %940 = vset.pattern.permute.xlu0 0
      %941 = vperm.xlu0 %940, %v640
      %v942 = vpop.permute.xlu0 %941
      %945 = vset.pattern.permute.xlu0 0
      %946 = vperm.xlu0 %945, %v642
      %v947 = vpop.permute.xlu0 %946
      %950 = vset.pattern.permute.xlu0 0
      %951 = vperm.xlu0 %950, %v644
      %v952 = vpop.permute.xlu0 %951
      %955 = vset.pattern.permute.xlu0 0
      %956 = vperm.xlu0 %955, %v646
      %v957 = vpop.permute.xlu0 %956
      %960 = vset.pattern.permute.xlu0 0
      %961 = vperm.xlu0 %960, %v648
      %v962 = vpop.permute.xlu0 %961
      %965 = vset.pattern.permute.xlu0 0
      %966 = vperm.xlu0 %965, %v650
      %v967 = vpop.permute.xlu0 %966
      %970 = vset.pattern.permute.xlu0 0
      %971 = vperm.xlu0 %970, %v652
      %v972 = vpop.permute.xlu0 %971
      %v974 = vmul.f32 %v897, %v878
      %v975 = vmul.f32 %v902, %v879
      %v976 = vmul.f32 %v907, %v880
      %v977 = vmul.f32 %v912, %v881
      %v978 = vmul.f32 %v917, %v882
      %v979 = vmul.f32 %v922, %v883
      %v980 = vmul.f32 %v927, %v884
      %v981 = vmul.f32 %v932, %v885
      %v982 = vmul.f32 %v937, %v886
      %v983 = vmul.f32 %v942, %v887
      %v984 = vmul.f32 %v947, %v888
      %v985 = vmul.f32 %v952, %v889
      %v986 = vmul.f32 %v957, %v890
      %v987 = vmul.f32 %v962, %v891
      %v988 = vmul.f32 %v967, %v892
      %v989 = vmul.f32 %v972, %v893
      %v990 = vpack.c.bf16 %v752, %v750
      %v991 = vpack.c.bf16 %v756, %v754
      %v992 = vpack.c.bf16 %v760, %v758
      %v993 = vpack.c.bf16 %v764, %v762
      %v994 = vpack.c.bf16 %v768, %v766
      %v995 = vpack.c.bf16 %v772, %v770
      %v996 = vpack.c.bf16 %v776, %v774
      %v997 = vpack.c.bf16 %v780, %v778
      %v1014 = vunpack.c.l.b16 %v359
      %v1015 = vunpack.c.l.b16 %v360
      %v1016 = vunpack.c.l.b16 %v361
      %v1017 = vunpack.c.l.b16 %v362
      %v1018 = vunpack.c.l.b16 %v363
      %v1019 = vunpack.c.l.b16 %v364
      %v1020 = vunpack.c.l.b16 %v365
      %v1021 = vunpack.c.l.b16 %v366
      %v1022 = vunpack.c.l.b16 %v367
      %v1023 = vunpack.c.l.b16 %v368
      %v1024 = vunpack.c.l.b16 %v369
      %v1025 = vunpack.c.l.b16 %v370
      %v1026 = vunpack.c.l.b16 %v371
      %v1027 = vunpack.c.l.b16 %v372
      %v1028 = vunpack.c.l.b16 %v373
      %v1029 = vunpack.c.l.b16 %v374
      %v1030 = vpack.c.b16 %v1015, %v1014
      %v1031 = vpack.c.b16 %v1017, %v1016
      %v1032 = vpack.c.b16 %v1019, %v1018
      %v1033 = vpack.c.b16 %v1021, %v1020
      %v1034 = vpack.c.b16 %v1023, %v1022
      %v1035 = vpack.c.b16 %v1025, %v1024
      %v1036 = vpack.c.b16 %v1027, %v1026
      %v1037 = vpack.c.b16 %v1029, %v1028
      %1046 = vmatprep.subr.bf16.mxu0 0
      %1047 = vmatpush1.bf16.msra.mxu0 %v1037
      %1048 = vmatprep.subr.bf16.mxu0 0
      %1049 = vmatpush1.bf16.msra.mxu0 %v1036
      %1050 = vmatprep.subr.bf16.mxu0 0
      %1051 = vmatpush1.bf16.msra.mxu0 %v1035
      %1052 = vmatprep.subr.bf16.mxu0 0
      %1053 = vmatpush1.bf16.msra.mxu0 %v1034
      %1054 = vmatprep.subr.bf16.mxu0 0
      %1055 = vmatpush1.bf16.msra.mxu0 %v1033
      %1056 = vmatprep.subr.bf16.mxu0 0
      %1057 = vmatpush1.bf16.msra.mxu0 %v1032
      %1058 = vmatprep.subr.bf16.mxu0 0
      %1059 = vmatpush1.bf16.msra.mxu0 %v1031
      %1060 = vmatprep.subr.bf16.mxu0 0
      %1061 = vmatpush1.bf16.msra.mxu0 %v1030
      %1062 = vmatprep.subr.bf16.mxu0 0
      %1063 = vmatpush2.bf16.msra.mxu0 0
      %1064 = vmatprep.subr.bf16.mxu0 0
      %1065 = vmatpush2.bf16.msra.mxu0 0
      %1066 = vmatprep.subr.bf16.mxu0 0
      %1067 = vmatpush2.bf16.msra.mxu0 0
      %1068 = vmatprep.subr.bf16.mxu0 0
      %1069 = vmatpush2.bf16.msra.mxu0 0
      %1070 = vmatprep.subr.bf16.mxu0 0
      %1071 = vmatpush2.bf16.msra.mxu0 0
      %1072 = vmatprep.subr.bf16.mxu0 0
      %1073 = vmatpush2.bf16.msra.mxu0 0
      %1074 = vmatprep.subr.bf16.mxu0 0
      %1075 = vmatpush2.bf16.msra.mxu0 0
      %1076 = vmatprep.subr.bf16.mxu0 0
      %1077 = vmatpush2.bf16.msra.mxu0 0
      %1078 = vmatprep.mubr.bf16.mxu0 0
      %1079 = vmatmul.mubr.bf16.gmra.mxu0 %v990
      %v1080 = vpop.f32.mrf.mxu0
      %v1081 = vadd.f32 0.0, %v1080
      %v1082 = vpop.f32.mrf.mxu0
      %v1083 = vpop.f32.mrf.mxu0
      %v1084 = vadd.f32 0.0, %v1083
      %v1085 = vpop.f32.mrf.mxu0
      %1086 = vmatprep.mubr.bf16.mxu0 0
      %1087 = vmatmul.mubr.bf16.gmra.mxu0 %v991
      %v1088 = vpop.f32.mrf.mxu0
      %v1089 = vadd.f32 0.0, %v1088
      %v1090 = vpop.f32.mrf.mxu0
      %v1091 = vpop.f32.mrf.mxu0
      %v1092 = vadd.f32 0.0, %v1091
      %v1093 = vpop.f32.mrf.mxu0
      %1094 = vmatprep.mubr.bf16.mxu0 0
      %1095 = vmatmul.mubr.bf16.gmra.mxu0 %v992
      %v1096 = vpop.f32.mrf.mxu0
      %v1097 = vadd.f32 0.0, %v1096
      %v1098 = vpop.f32.mrf.mxu0
      %v1099 = vpop.f32.mrf.mxu0
      %v1100 = vadd.f32 0.0, %v1099
      %v1101 = vpop.f32.mrf.mxu0
      %1102 = vmatprep.mubr.bf16.mxu0 0
      %1103 = vmatmul.mubr.bf16.gmra.mxu0 %v993
      %v1104 = vpop.f32.mrf.mxu0
      %v1105 = vadd.f32 0.0, %v1104
      %v1106 = vpop.f32.mrf.mxu0
      %v1107 = vpop.f32.mrf.mxu0
      %v1108 = vadd.f32 0.0, %v1107
      %v1109 = vpop.f32.mrf.mxu0
      %1110 = vmatprep.mubr.bf16.mxu0 0
      %1111 = vmatmul.mubr.bf16.gmra.mxu0 %v994
      %v1112 = vpop.f32.mrf.mxu0
      %v1113 = vadd.f32 0.0, %v1112
      %v1114 = vpop.f32.mrf.mxu0
      %v1115 = vpop.f32.mrf.mxu0
      %v1116 = vadd.f32 0.0, %v1115
      %v1117 = vpop.f32.mrf.mxu0
      %1118 = vmatprep.mubr.bf16.mxu0 0
      %1119 = vmatmul.mubr.bf16.gmra.mxu0 %v995
      %v1120 = vpop.f32.mrf.mxu0
      %v1121 = vadd.f32 0.0, %v1120
      %v1122 = vpop.f32.mrf.mxu0
      %v1123 = vpop.f32.mrf.mxu0
      %v1124 = vadd.f32 0.0, %v1123
      %v1125 = vpop.f32.mrf.mxu0
      %1126 = vmatprep.mubr.bf16.mxu0 0
      %1127 = vmatmul.mubr.bf16.gmra.mxu0 %v996
      %v1128 = vpop.f32.mrf.mxu0
      %v1129 = vadd.f32 0.0, %v1128
      %v1130 = vpop.f32.mrf.mxu0
      %v1131 = vpop.f32.mrf.mxu0
      %v1132 = vadd.f32 0.0, %v1131
      %v1133 = vpop.f32.mrf.mxu0
      %1134 = vmatprep.mubr.bf16.mxu0 0
      %1135 = vmatmul.mubr.bf16.gmra.mxu0 %v997
      %v1136 = vpop.f32.mrf.mxu0
      %v1137 = vadd.f32 0.0, %v1136
      %v1138 = vpop.f32.mrf.mxu0
      %v1139 = vpop.f32.mrf.mxu0
      %v1140 = vadd.f32 0.0, %v1139
      %v1141 = vpop.f32.mrf.mxu0
      %1142 = vdwg.mxu0
      %v1143 = vadd.f32 %v974, %v1081
      %v1144 = vadd.f32 %v975, %v1084
      %v1145 = vadd.f32 %v976, %v1089
      %v1146 = vadd.f32 %v977, %v1092
      %v1147 = vadd.f32 %v978, %v1097
      %v1148 = vadd.f32 %v979, %v1100
      %v1149 = vadd.f32 %v980, %v1105
      %v1150 = vadd.f32 %v981, %v1108
      %v1151 = vadd.f32 %v982, %v1113
      %v1152 = vadd.f32 %v983, %v1116
      %v1153 = vadd.f32 %v984, %v1121
      %v1154 = vadd.f32 %v985, %v1124
      %v1155 = vadd.f32 %v986, %v1129
      %v1156 = vadd.f32 %v987, %v1132
      %v1157 = vadd.f32 %v988, %v1137
      %v1158 = vadd.f32 %v989, %v1140
      %1159 = vst.msk [vmem:[#allocation4] sm:$0xff] %vm415, %v1143
      %1160 = vst.msk [vmem:[#allocation4 + $0x8] sm:$0xff] %vm415, %v1144
      %1161 = vst.msk [vmem:[#allocation4 + $0x10] sm:$0xff] %vm415, %v1145
      %1162 = vst.msk [vmem:[#allocation4 + $0x18] sm:$0xff] %vm415, %v1146
      %1163 = vst.msk [vmem:[#allocation4 + $0x20] sm:$0xff] %vm415, %v1147
      %1164 = vst.msk [vmem:[#allocation4 + $0x28] sm:$0xff] %vm415, %v1148
      %1165 = vst.msk [vmem:[#allocation4 + $0x30] sm:$0xff] %vm415, %v1149
      %1166 = vst.msk [vmem:[#allocation4 + $0x38] sm:$0xff] %vm415, %v1150
      %1167 = vst.msk [vmem:[#allocation4 + $0x40] sm:$0xff] %vm415, %v1151
      %1168 = vst.msk [vmem:[#allocation4 + $0x48] sm:$0xff] %vm415, %v1152
      %1169 = vst.msk [vmem:[#allocation4 + $0x50] sm:$0xff] %vm415, %v1153
      %1170 = vst.msk [vmem:[#allocation4 + $0x58] sm:$0xff] %vm415, %v1154
      %1171 = vst.msk [vmem:[#allocation4 + $0x60] sm:$0xff] %vm415, %v1155
      %1172 = vst.msk [vmem:[#allocation4 + $0x68] sm:$0xff] %vm415, %v1156
      %1173 = vst.msk [vmem:[#allocation4 + $0x70] sm:$0xff] %vm415, %v1157
      %1174 = vst.msk [vmem:[#allocation4 + $0x78] sm:$0xff] %vm415, %v1158
      %1175 = vst.msk [vmem:[#allocation2] sm:$0xff] %vm861, %v589
      %1176 = vst.msk [vmem:[#allocation2 + $0x8] sm:$0xff] %vm861, %v590
      %1177 = vst.msk [vmem:[#allocation2 + $0x10] sm:$0xff] %vm861, %v591
      %1178 = vst.msk [vmem:[#allocation2 + $0x18] sm:$0xff] %vm861, %v592
      %1179 = vst.msk [vmem:[#allocation2 + $0x20] sm:$0xff] %vm861, %v593
      %1180 = vst.msk [vmem:[#allocation2 + $0x28] sm:$0xff] %vm861, %v594
      %1181 = vst.msk [vmem:[#allocation2 + $0x30] sm:$0xff] %vm861, %v595
      %1182 = vst.msk [vmem:[#allocation2 + $0x38] sm:$0xff] %vm861, %v596
      %1183 = vst.msk [vmem:[#allocation2 + $0x40] sm:$0xff] %vm861, %v597
      %1184 = vst.msk [vmem:[#allocation2 + $0x48] sm:$0xff] %vm861, %v598
      %1185 = vst.msk [vmem:[#allocation2 + $0x50] sm:$0xff] %vm861, %v599
      %1186 = vst.msk [vmem:[#allocation2 + $0x58] sm:$0xff] %vm861, %v600
      %1187 = vst.msk [vmem:[#allocation2 + $0x60] sm:$0xff] %vm861, %v601
      %1188 = vst.msk [vmem:[#allocation2 + $0x68] sm:$0xff] %vm861, %v602
      %1189 = vst.msk [vmem:[#allocation2 + $0x70] sm:$0xff] %vm861, %v603
      %1190 = vst.msk [vmem:[#allocation2 + $0x78] sm:$0xff] %vm861, %v604
      %p1191 = scmp.eq.s32.totalorder %s21, 1
      // Predicated region
      $region37: #{non_local_forward.4} parent=31 // pred_check
        %p1192 = pneg %p1191
      $region38: #{non_local_forward.4} parent=31 // pred_check_branch
        %1194 = sbr.rel (%p1192) target = $region40
      $region39: #{non_local_forward.4} parent=31 // pred_region
        %v1195 = vld [vmem:[#allocation4] sm:$0xff]
        %v1196 = vld [vmem:[#allocation4 + $0x8] sm:$0xff]
        %v1197 = vld [vmem:[#allocation4 + $0x10] sm:$0xff]
        %v1198 = vld [vmem:[#allocation4 + $0x18] sm:$0xff]
        %v1199 = vld [vmem:[#allocation4 + $0x20] sm:$0xff]
        %v1200 = vld [vmem:[#allocation4 + $0x28] sm:$0xff]
        %v1201 = vld [vmem:[#allocation4 + $0x30] sm:$0xff]
        %v1202 = vld [vmem:[#allocation4 + $0x38] sm:$0xff]
        %v1203 = vld [vmem:[#allocation4 + $0x40] sm:$0xff]
        %v1204 = vld [vmem:[#allocation4 + $0x48] sm:$0xff]
        %v1205 = vld [vmem:[#allocation4 + $0x50] sm:$0xff]
        %v1206 = vld [vmem:[#allocation4 + $0x58] sm:$0xff]
        %v1207 = vld [vmem:[#allocation4 + $0x60] sm:$0xff]
        %v1208 = vld [vmem:[#allocation4 + $0x68] sm:$0xff]
        %v1209 = vld [vmem:[#allocation4 + $0x70] sm:$0xff]
        %v1210 = vld [vmem:[#allocation4 + $0x78] sm:$0xff]
        %v1211 = vld [vmem:[#allocation3] sm:$0xff]
        %v1212 = vld [vmem:[#allocation3 + $0x8] sm:$0xff]
        %v1213 = vld [vmem:[#allocation3 + $0x10] sm:$0xff]
        %v1214 = vld [vmem:[#allocation3 + $0x18] sm:$0xff]
        %v1215 = vld [vmem:[#allocation3 + $0x20] sm:$0xff]
        %v1216 = vld [vmem:[#allocation3 + $0x28] sm:$0xff]
        %v1217 = vld [vmem:[#allocation3 + $0x30] sm:$0xff]
        %v1218 = vld [vmem:[#allocation3 + $0x38] sm:$0xff]
        %v1219 = vld [vmem:[#allocation3 + $0x40] sm:$0xff]
        %v1220 = vld [vmem:[#allocation3 + $0x48] sm:$0xff]
        %v1221 = vld [vmem:[#allocation3 + $0x50] sm:$0xff]
        %v1222 = vld [vmem:[#allocation3 + $0x58] sm:$0xff]
        %v1223 = vld [vmem:[#allocation3 + $0x60] sm:$0xff]
        %v1224 = vld [vmem:[#allocation3 + $0x68] sm:$0xff]
        %v1225 = vld [vmem:[#allocation3 + $0x70] sm:$0xff]
        %v1226 = vld [vmem:[#allocation3 + $0x78] sm:$0xff]
        %v1227 = vrcp.pop %v1211
        %v1228 = vrcp.pop %v1212
        %v1229 = vrcp.pop %v1213
        %v1230 = vrcp.pop %v1214
        %v1231 = vrcp.pop %v1215
        %v1232 = vrcp.pop %v1216
        %v1233 = vrcp.pop %v1217
        %v1234 = vrcp.pop %v1218
        %v1235 = vrcp.pop %v1219
        %v1236 = vrcp.pop %v1220
        %v1237 = vrcp.pop %v1221
        %v1238 = vrcp.pop %v1222
        %v1239 = vrcp.pop %v1223
        %v1240 = vrcp.pop %v1224
        %v1241 = vrcp.pop %v1225
        %v1242 = vrcp.pop %v1226
        %1244 = vset.pattern.permute.xlu0 0
        %1245 = vperm.xlu0 %1244, %v1227
        %v1246 = vpop.permute.xlu0 %1245
        %1249 = vset.pattern.permute.xlu0 0
        %1250 = vperm.xlu0 %1249, %v1228
        %v1251 = vpop.permute.xlu0 %1250
        %1254 = vset.pattern.permute.xlu0 0
        %1255 = vperm.xlu0 %1254, %v1229
        %v1256 = vpop.permute.xlu0 %1255
        %1259 = vset.pattern.permute.xlu0 0
        %1260 = vperm.xlu0 %1259, %v1230
        %v1261 = vpop.permute.xlu0 %1260
        %1264 = vset.pattern.permute.xlu0 0
        %1265 = vperm.xlu0 %1264, %v1231
        %v1266 = vpop.permute.xlu0 %1265
        %1269 = vset.pattern.permute.xlu0 0
        %1270 = vperm.xlu0 %1269, %v1232
        %v1271 = vpop.permute.xlu0 %1270
        %1274 = vset.pattern.permute.xlu0 0
        %1275 = vperm.xlu0 %1274, %v1233
        %v1276 = vpop.permute.xlu0 %1275
        %1279 = vset.pattern.permute.xlu0 0
        %1280 = vperm.xlu0 %1279, %v1234
        %v1281 = vpop.permute.xlu0 %1280
        %1284 = vset.pattern.permute.xlu0 0
        %1285 = vperm.xlu0 %1284, %v1235
        %v1286 = vpop.permute.xlu0 %1285
        %1289 = vset.pattern.permute.xlu0 0
        %1290 = vperm.xlu0 %1289, %v1236
        %v1291 = vpop.permute.xlu0 %1290
        %1294 = vset.pattern.permute.xlu0 0
        %1295 = vperm.xlu0 %1294, %v1237
        %v1296 = vpop.permute.xlu0 %1295
        %1299 = vset.pattern.permute.xlu0 0
        %1300 = vperm.xlu0 %1299, %v1238
        %v1301 = vpop.permute.xlu0 %1300
        %1304 = vset.pattern.permute.xlu0 0
        %1305 = vperm.xlu0 %1304, %v1239
        %v1306 = vpop.permute.xlu0 %1305
        %1309 = vset.pattern.permute.xlu0 0
        %1310 = vperm.xlu0 %1309, %v1240
        %v1311 = vpop.permute.xlu0 %1310
        %1314 = vset.pattern.permute.xlu0 0
        %1315 = vperm.xlu0 %1314, %v1241
        %v1316 = vpop.permute.xlu0 %1315
        %1319 = vset.pattern.permute.xlu0 0
        %1320 = vperm.xlu0 %1319, %v1242
        %v1321 = vpop.permute.xlu0 %1320
        %v1323 = vmul.f32 %v1195, %v1246
        %v1324 = vmul.f32 %v1196, %v1251
        %v1325 = vmul.f32 %v1197, %v1256
        %v1326 = vmul.f32 %v1198, %v1261
        %v1327 = vmul.f32 %v1199, %v1266
        %v1328 = vmul.f32 %v1200, %v1271
        %v1329 = vmul.f32 %v1201, %v1276
        %v1330 = vmul.f32 %v1202, %v1281
        %v1331 = vmul.f32 %v1203, %v1286
        %v1332 = vmul.f32 %v1204, %v1291
        %v1333 = vmul.f32 %v1205, %v1296
        %v1334 = vmul.f32 %v1206, %v1301
        %v1335 = vmul.f32 %v1207, %v1306
        %v1336 = vmul.f32 %v1208, %v1311
        %v1337 = vmul.f32 %v1209, %v1316
        %v1338 = vmul.f32 %v1210, %v1321
        %v1339 = vpack.c.bf16 %v1324, %v1323
        %v1340 = vpack.c.bf16 %v1326, %v1325
        %v1341 = vpack.c.bf16 %v1328, %v1327
        %v1342 = vpack.c.bf16 %v1330, %v1329
        %v1343 = vpack.c.bf16 %v1332, %v1331
        %v1344 = vpack.c.bf16 %v1334, %v1333
        %v1345 = vpack.c.bf16 %v1336, %v1335
        %v1346 = vpack.c.bf16 %v1338, %v1337
        %v1355 = vunpack.c.l.b16 %v1339
        %v1356 = vunpack.c.h.b16 %v1339
        %v1357 = vunpack.c.l.b16 %v1340
        %v1358 = vunpack.c.h.b16 %v1340
        %v1359 = vunpack.c.l.b16 %v1341
        %v1360 = vunpack.c.h.b16 %v1341
        %v1361 = vunpack.c.l.b16 %v1342
        %v1362 = vunpack.c.h.b16 %v1342
        %v1363 = vunpack.c.l.b16 %v1343
        %v1364 = vunpack.c.h.b16 %v1343
        %v1365 = vunpack.c.l.b16 %v1344
        %v1366 = vunpack.c.h.b16 %v1344
        %v1367 = vunpack.c.l.b16 %v1345
        %v1368 = vunpack.c.h.b16 %v1345
        %v1369 = vunpack.c.l.b16 %v1346
        %v1370 = vunpack.c.h.b16 %v1346
        %v1371 = vpack.c.b16 %v1355, %v1355
        %v1372 = vpack.c.b16 %v1356, %v1356
        %v1373 = vpack.c.b16 %v1357, %v1357
        %v1374 = vpack.c.b16 %v1358, %v1358
        %v1375 = vpack.c.b16 %v1359, %v1359
        %v1376 = vpack.c.b16 %v1360, %v1360
        %v1377 = vpack.c.b16 %v1361, %v1361
        %v1378 = vpack.c.b16 %v1362, %v1362
        %v1379 = vpack.c.b16 %v1363, %v1363
        %v1380 = vpack.c.b16 %v1364, %v1364
        %v1381 = vpack.c.b16 %v1365, %v1365
        %v1382 = vpack.c.b16 %v1366, %v1366
        %v1383 = vpack.c.b16 %v1367, %v1367
        %v1384 = vpack.c.b16 %v1368, %v1368
        %v1385 = vpack.c.b16 %v1369, %v1369
        %v1386 = vpack.c.b16 %v1370, %v1370
        %vm1403 = vcmask 11264
        %1404 = vst.msk [vmem:[%s285] sm:$0xf] %vm1403, %v1371
        %1405 = vst.msk [vmem:[%s285 + $0x4] sm:$0xf] %vm1403, %v1372
        %1406 = vst.msk [vmem:[%s285 + $0x8] sm:$0xf] %vm1403, %v1373
        %1407 = vst.msk [vmem:[%s285 + $0xc] sm:$0xf] %vm1403, %v1374
        %1408 = vst.msk [vmem:[%s285 + $0x10] sm:$0xf] %vm1403, %v1375
        %1409 = vst.msk [vmem:[%s285 + $0x14] sm:$0xf] %vm1403, %v1376
        %1410 = vst.msk [vmem:[%s285 + $0x18] sm:$0xf] %vm1403, %v1377
        %1411 = vst.msk [vmem:[%s285 + $0x1c] sm:$0xf] %vm1403, %v1378
        %1412 = vst.msk [vmem:[%s285 + $0x20] sm:$0xf] %vm1403, %v1379
        %1413 = vst.msk [vmem:[%s285 + $0x24] sm:$0xf] %vm1403, %v1380
        %1414 = vst.msk [vmem:[%s285 + $0x28] sm:$0xf] %vm1403, %v1381
        %1415 = vst.msk [vmem:[%s285 + $0x2c] sm:$0xf] %vm1403, %v1382
        %1416 = vst.msk [vmem:[%s285 + $0x30] sm:$0xf] %vm1403, %v1383
        %1417 = vst.msk [vmem:[%s285 + $0x34] sm:$0xf] %vm1403, %v1384
        %1418 = vst.msk [vmem:[%s285 + $0x38] sm:$0xf] %vm1403, %v1385
        %1419 = vst.msk [vmem:[%s285 + $0x3c] sm:$0xf] %vm1403, %v1386
      $region40: #{non_local_forward.4} parent=31 // pred_fallthru
        _
      %s1420 = smul.u32 16, %s20
      %p1421 = scmp.lt.s32.totalorder %s19, 1
      %s1422 = scalar_select %p1421, %s19, 1
      %p1423 = scmp.lt.s32.totalorder %s1420, 31
      %s1424 = scalar_select %p1423, %s1420, 31
      %s1425 = smul.addr %s1422, 32
      %s1426 = sadd.s32 %s1424, %s1425
      %s1427 = smul.addr %s1426, 4
      %s1428 = scalar_lea.vmem %s3, %s1427
      // Predicated region
      $region41: #{non_local_forward.4} parent=31 // pred_check
        %p1429 = pneg %p137
      $region42: #{non_local_forward.4} parent=31 // pred_check_branch
        %1431 = sbr.rel (%p1429) target = $region44
      $region43: #{non_local_forward.4} parent=31 // pred_region
        %s1432 = smul.u32 16, %s20
      $region44: #{non_local_forward.4} parent=31 // pred_fallthru
        _
    $region32: #{non_local_forward.4} parent=5 // pred_fallthru
      _
    %p1433 = scmp.le.s32.totalorder 2, %s9
    // Predicated region
    $region45: #{non_local_forward.4} parent=5 // pred_check
      %p1434 = pneg %p1433
    $region46: #{non_local_forward.4} parent=5 // pred_check_branch
      %1436 = sbr.rel (%p1434) target = $region48
    $region47: #{non_local_forward.4} parent=5 // pred_region
      %s1437 = ssub.s32 %s9, 2
      // Predicated region
      $region49: #{non_local_forward.4} parent=47 // pred_check
        %p1438 = pneg %p143
      $region50: #{non_local_forward.4} parent=47 // pred_check_branch
        %1440 = sbr.rel (%p1438) target = $region52
      $region51: #{non_local_forward.4} parent=47 // pred_region
        %s1441 = smul.u32 16, %s23
        %p1442 = scmp.lt.s32.totalorder %s22, 1
        %s1443 = scalar_select %p1442, %s22, 1
        %p1444 = scmp.lt.s32.totalorder %s1441, 31
        %s1445 = scalar_select %p1444, %s1441, 31
        %s1446 = smul.addr %s1443, 32
        %s1447 = sadd.s32 %s1445, %s1446
        %s1448 = smul.addr %s1447, 4
        %s1449 = scalar_lea.vmem %s3, %s1448
      $region52: #{non_local_forward.4} parent=47 // pred_fallthru
        _
    $region48: #{non_local_forward.4} parent=5 // pred_fallthru
      _
  $region6: #{non_local_forward.4} parent=0 // loop_footer
    %s13 = sadd.s32 1, %s9
  $region7: #{non_local_forward.4} parent=0 // loop_footer_branch
    %8 = sbr.rel target = $region3
  $region8: #{non_local_forward.4} parent=0 // loop_exit
    _

// kernel: non_local_forward.5
$region0: #{non_local_forward.5}
  #allocation0 [shape = 'u32[]', space=smem, size = 0x4, offset = 0x4, fixed_abs, tag = 'smem constant byte address 0x4 - core index']
  #allocation1 [shape = 'u32[144,128]{1,0:T(1,128)}', space=vmem, size = 0x12000, scoped, tag = 'internal scratch']
  %s0 = inlined_call_operand.vmem [shape: bf16[2,2,256], index: 0, kind: input, shape index: {}]
  %s1 = inlined_call_operand.vmem [shape: f32[2,4,256], index: 1, kind: input, shape index: {}]
  %s2 = inlined_call_operand.vmem [shape: bf16[2,4,4], index: 2, kind: input, shape index: {}]
  %s3 = inlined_call_operand.vmem [shape: bf16[4,2], index: 3, kind: input, shape index: {}]
  %s4 = inlined_call_operand.vmem [shape: bf16[4,4], index: 4, kind: input, shape index: {}]
  %s5 = inlined_call_operand.vmem [shape: f32[4,1], index: 5, kind: input, shape index: {}]
  %s6 = inlined_call_operand.vmem [shape: f32[2,4,256], index: 6, kind: output, shape index: {}]
  %s7 = sld [smem:[#allocation0]]
  $region57: #{non_local_forward.5} parent=0
    _
  %s9 = ssub.s32 1, %s7
  %s10 = scalar_select 0, %s9, %s7
  loop: start=0, step=1, limit=6
  $region2: #{non_local_forward.5} parent=0 // loop_pre_header
    _
  $region3: #{non_local_forward.5} parent=0 // loop_header
    %s12 = sphi 0, %s16
    %p13 = scmp.ge.s32.totalorder %s12, 6
    %s19 = sphi 0, %s31
    %s20 = sphi 0, %s27
    %s21 = sphi 0, %s19
    %s22 = sphi 0, %s20
    %s23 = sphi 0, %s21
    %s24 = sphi 0, %s22
    %s36 = sphi 0, %s38
    %s39 = sphi 0, %s36
    %s40 = sphi 0, %s39
    %s56 = sphi 0, %s40
    %s64 = sphi 0, %s66
    %s67 = sphi 0, %s64
    %s68 = sphi 0, %s67
    %s84 = sphi 0, %s68
    %s90 = sphi 0, %s92
    %s93 = sphi 0, %s90
    %s94 = sphi 0, %s93
    %s110 = sphi 0, %s94
    %s114 = sphi 0, %s114
    %s116 = sphi 0, %s114
    %s117 = sphi 0, %s116
    %s131 = sphi 0, %s117
    %s135 = sphi 0, %s135
    %s137 = sphi 0, %s135
    %s138 = sphi 0, %s137
    %s152 = sphi 0, %s138
    %s156 = sphi 0, %s156
    %s158 = sphi 0, %s156
    %s159 = sphi 0, %s158
    %s173 = sphi 0, %s159
    %s181 = sphi 0, %s183
    %s184 = sphi 0, %s181
    %s185 = sphi 0, %s184
    %s201 = sphi 0, %s185
  $region4: #{non_local_forward.5} parent=0 // loop_header_branch
    %15 = sbr.rel (%p13) target = $region8
  $region5: #{non_local_forward.5} parent=0 // loop_body
    %s17 = ssub.s32 %s12, 1
    %s18 = ssub.s32 %s12, 2
    %s25 = sadd.s32 1, %s20
    %p26 = scmp.ge.s32.totalorder %s25, 2
    %s27 = scalar_select %p26, 0, %s25
    %s28 = sadd.s32 1, %s19
    %s29 = scalar_select %p26, %s28, %s19
    %p30 = scmp.ge.s32.totalorder %s29, 2
    %s31 = scalar_select %p30, 0, %s29
    %s32 = ssub.s32 %s19, %s31
    %s33 = ssub.s32 %s20, %s27
    %s34 = sor.u32 %s32, %s33
    %p35 = scmp.eq.s32.totalorder %s34, 0
    %s37 = sadd.s32 %s36, 1
    %s38 = scalar_select %p35, %s36, %s37
    %p41 = pneg %p35
    %p42 = scmp.eq.s32.totalorder %s12, 3
    %p43 = por %p41, %p42
    %p44 = scmp.ne.s32.totalorder %s36, %s39
    %p45 = scmp.eq.s32.totalorder %s12, 0
    %p46 = por %p44, %p45
    %p47 = scmp.ne.s32.totalorder %s36, %s39
    %p48 = scmp.eq.s32.totalorder %s17, 3
    %p49 = por %p47, %p48
    %p50 = scmp.ne.s32.totalorder %s39, %s40
    %p51 = scmp.eq.s32.totalorder %s17, 0
    %p52 = por %p50, %p51
    %p53 = scmp.ne.s32.totalorder %s39, %s40
    %p54 = scmp.eq.s32.totalorder %s18, 3
    %p55 = por %p53, %p54
    %p57 = scmp.ne.s32.totalorder %s40, %s56
    %p58 = scmp.eq.s32.totalorder %s18, 0
    %p59 = por %p57, %p58
    %s60 = ssub.s32 %s19, %s31
    %s61 = ssub.s32 %s20, %s27
    %s62 = sor.u32 %s60, %s61
    %p63 = scmp.eq.s32.totalorder %s62, 0
    %s65 = sadd.s32 %s64, 1
    %s66 = scalar_select %p63, %s64, %s65
    %p69 = pneg %p63
    %p70 = scmp.eq.s32.totalorder %s12, 3
    %p71 = por %p69, %p70
    %p72 = scmp.ne.s32.totalorder %s64, %s67
    %p73 = scmp.eq.s32.totalorder %s12, 0
    %p74 = por %p72, %p73
    %p75 = scmp.ne.s32.totalorder %s64, %s67
    %p76 = scmp.eq.s32.totalorder %s17, 3
    %p77 = por %p75, %p76
    %p78 = scmp.ne.s32.totalorder %s67, %s68
    %p79 = scmp.eq.s32.totalorder %s17, 0
    %p80 = por %p78, %p79
    %p81 = scmp.ne.s32.totalorder %s67, %s68
    %p82 = scmp.eq.s32.totalorder %s18, 3
    %p83 = por %p81, %p82
    %p85 = scmp.ne.s32.totalorder %s68, %s84
    %p86 = scmp.eq.s32.totalorder %s18, 0
    %p87 = por %p85, %p86
    %s88 = ssub.s32 %s19, %s31
    %p89 = scmp.eq.s32.totalorder %s88, 0
    %s91 = sadd.s32 %s90, 1
    %s92 = scalar_select %p89, %s90, %s91
    %p95 = pneg %p89
    %p96 = scmp.eq.s32.totalorder %s12, 3
    %p97 = por %p95, %p96
    %p98 = scmp.ne.s32.totalorder %s90, %s93
    %p99 = scmp.eq.s32.totalorder %s12, 0
    %p100 = por %p98, %p99
    %p101 = scmp.ne.s32.totalorder %s90, %s93
    %p102 = scmp.eq.s32.totalorder %s17, 3
    %p103 = por %p101, %p102
    %p104 = scmp.ne.s32.totalorder %s93, %s94
    %p105 = scmp.eq.s32.totalorder %s17, 0
    %p106 = por %p104, %p105
    %p107 = scmp.ne.s32.totalorder %s93, %s94
    %p108 = scmp.eq.s32.totalorder %s18, 3
    %p109 = por %p107, %p108
    %p111 = scmp.ne.s32.totalorder %s94, %s110
    %p112 = scmp.eq.s32.totalorder %s18, 0
    %p113 = por %p111, %p112
    %s115 = sadd.s32 %s114, 1
    %p118 = scmp.eq.s32.totalorder %s12, 3
    %p119 = scmp.ne.s32.totalorder %s114, %s116
    %p120 = scmp.eq.s32.totalorder %s12, 0
    %p121 = por %p119, %p120
    %p122 = scmp.ne.s32.totalorder %s114, %s116
    %p123 = scmp.eq.s32.totalorder %s17, 3
    %p124 = por %p122, %p123
    %p125 = scmp.ne.s32.totalorder %s116, %s117
    %p126 = scmp.eq.s32.totalorder %s17, 0
    %p127 = por %p125, %p126
    %p128 = scmp.ne.s32.totalorder %s116, %s117
    %p129 = scmp.eq.s32.totalorder %s18, 3
    %p130 = por %p128, %p129
    %p132 = scmp.ne.s32.totalorder %s117, %s131
    %p133 = scmp.eq.s32.totalorder %s18, 0
    %p134 = por %p132, %p133
    %s136 = sadd.s32 %s135, 1
    %p139 = scmp.eq.s32.totalorder %s12, 3
    %p140 = scmp.ne.s32.totalorder %s135, %s137
    %p141 = scmp.eq.s32.totalorder %s12, 0
    %p142 = por %p140, %p141
    %p143 = scmp.ne.s32.totalorder %s135, %s137
    %p144 = scmp.eq.s32.totalorder %s17, 3
    %p145 = por %p143, %p144
    %p146 = scmp.ne.s32.totalorder %s137, %s138
    %p147 = scmp.eq.s32.totalorder %s17, 0
    %p148 = por %p146, %p147
    %p149 = scmp.ne.s32.totalorder %s137, %s138
    %p150 = scmp.eq.s32.totalorder %s18, 3
    %p151 = por %p149, %p150
    %p153 = scmp.ne.s32.totalorder %s138, %s152
    %p154 = scmp.eq.s32.totalorder %s18, 0
    %p155 = por %p153, %p154
    %s157 = sadd.s32 %s156, 1
    %p160 = scmp.eq.s32.totalorder %s12, 3
    %p161 = scmp.ne.s32.totalorder %s156, %s158
    %p162 = scmp.eq.s32.totalorder %s12, 0
    %p163 = por %p161, %p162
    %p164 = scmp.ne.s32.totalorder %s156, %s158
    %p165 = scmp.eq.s32.totalorder %s17, 3
    %p166 = por %p164, %p165
    %p167 = scmp.ne.s32.totalorder %s158, %s159
    %p168 = scmp.eq.s32.totalorder %s17, 0
    %p169 = por %p167, %p168
    %p170 = scmp.ne.s32.totalorder %s158, %s159
    %p171 = scmp.eq.s32.totalorder %s18, 3
    %p172 = por %p170, %p171
    %p174 = scmp.ne.s32.totalorder %s159, %s173
    %p175 = scmp.eq.s32.totalorder %s18, 0
    %p176 = por %p174, %p175
    %s177 = ssub.s32 %s19, %s31
    %s178 = ssub.s32 %s20, %s27
    %s179 = sor.u32 %s177, %s178
    %p180 = scmp.eq.s32.totalorder %s179, 0
    %s182 = sadd.s32 %s181, 1
    %s183 = scalar_select %p180, %s181, %s182
    %p186 = pneg %p180
    %p187 = scmp.eq.s32.totalorder %s12, 3
    %p188 = por %p186, %p187
    %p189 = scmp.ne.s32.totalorder %s181, %s184
    %p190 = scmp.eq.s32.totalorder %s12, 0
    %p191 = por %p189, %p190
    %p192 = scmp.ne.s32.totalorder %s181, %s184
    %p193 = scmp.eq.s32.totalorder %s17, 3
    %p194 = por %p192, %p193
    %p195 = scmp.ne.s32.totalorder %s184, %s185
    %p196 = scmp.eq.s32.totalorder %s17, 0
    %p197 = por %p195, %p196
    %p198 = scmp.ne.s32.totalorder %s184, %s185
    %p199 = scmp.eq.s32.totalorder %s18, 3
    %p200 = por %p198, %p199
    %p202 = scmp.ne.s32.totalorder %s185, %s201
    %p203 = scmp.eq.s32.totalorder %s18, 0
    %p204 = por %p202, %p203
    %p205 = scmp.le.s32.totalorder 1, %s12
    %p206 = scmp.lt.s32.totalorder %s12, 5
    %p207 = pnand %p205, %p206
    %p208 = pneg %p207
    // Predicated region
    $region9: #{non_local_forward.5} parent=5 // pred_check
      _
    $region10: #{non_local_forward.5} parent=5 // pred_check_branch
      %210 = sbr.rel (%p207) target = $region12
    $region11: #{non_local_forward.5} parent=5 // pred_region
      %s211 = ssub.s32 %s12, 1
      // Predicated region
      $region13: #{non_local_forward.5} parent=11 // pred_check
        %p212 = pneg %p127
      $region14: #{non_local_forward.5} parent=11 // pred_check_branch
        %214 = sbr.rel (%p212) target = $region16
      $region15: #{non_local_forward.5} parent=11 // pred_region
        _
      $region16: #{non_local_forward.5} parent=11 // pred_fallthru
        _
      // Predicated region
      $region17: #{non_local_forward.5} parent=11 // pred_check
        %p215 = pneg %p148
      $region18: #{non_local_forward.5} parent=11 // pred_check_branch
        %217 = sbr.rel (%p215) target = $region20
      $region19: #{non_local_forward.5} parent=11 // pred_region
        _
      $region20: #{non_local_forward.5} parent=11 // pred_fallthru
        _
      // Predicated region
      $region21: #{non_local_forward.5} parent=11 // pred_check
        %p218 = pneg %p169
      $region22: #{non_local_forward.5} parent=11 // pred_check_branch
        %220 = sbr.rel (%p218) target = $region24
      $region23: #{non_local_forward.5} parent=11 // pred_region
        _
      $region24: #{non_local_forward.5} parent=11 // pred_fallthru
        _
    $region12: #{non_local_forward.5} parent=5 // pred_fallthru
      _
    %p221 = scmp.lt.s32.totalorder %s12, 4
    // Predicated region
    $region25: #{non_local_forward.5} parent=5 // pred_check
      %p222 = pneg %p221
    $region26: #{non_local_forward.5} parent=5 // pred_check_branch
      %224 = sbr.rel (%p222) target = $region28
    $region27: #{non_local_forward.5} parent=5 // pred_region
      // Predicated region
      $region29: #{non_local_forward.5} parent=27 // pred_check
        %p225 = pneg %p46
      $region30: #{non_local_forward.5} parent=27 // pred_check_branch
        %227 = sbr.rel (%p225) target = $region32
      $region31: #{non_local_forward.5} parent=27 // pred_region
        %p228 = scmp.lt.s32.totalorder %s19, 1
        %s229 = scalar_select %p228, %s19, 1
        %p230 = scmp.lt.s32.totalorder %s20, 1
        %s231 = scalar_select %p230, %s20, 1
        %s232 = smul.addr %s229, 2
        %s233 = sadd.s32 %s231, %s232
        %s234 = scalar_lea.vmem %s0, %s233
      $region32: #{non_local_forward.5} parent=27 // pred_fallthru
        _
      // Predicated region
      $region33: #{non_local_forward.5} parent=27 // pred_check
        %p235 = pneg %p74
      $region34: #{non_local_forward.5} parent=27 // pred_check_branch
        %237 = sbr.rel (%p235) target = $region36
      $region35: #{non_local_forward.5} parent=27 // pred_region
        %p238 = scmp.lt.s32.totalorder %s19, 1
        %s239 = scalar_select %p238, %s19, 1
        %p240 = scmp.lt.s32.totalorder %s20, 1
        %s241 = scalar_select %p240, %s20, 1
        %s242 = smul.addr %s239, 2
        %s243 = sadd.s32 %s241, %s242
        %s244 = smul.addr %s243, 4
        %s245 = scalar_lea.vmem %s1, %s244
      $region36: #{non_local_forward.5} parent=27 // pred_fallthru
        _
      // Predicated region
      $region37: #{non_local_forward.5} parent=27 // pred_check
        %p246 = pneg %p100
      $region38: #{non_local_forward.5} parent=27 // pred_check_branch
        %248 = sbr.rel (%p246) target = $region40
      $region39: #{non_local_forward.5} parent=27 // pred_region
        %p249 = scmp.lt.s32.totalorder %s19, 1
        %s250 = scalar_select %p249, %s19, 1
        %s251 = smul.addr %s250, 2
        %s252 = scalar_lea.vmem %s2, %s251
      $region40: #{non_local_forward.5} parent=27 // pred_fallthru
        _
    $region28: #{non_local_forward.5} parent=5 // pred_fallthru
      _
    %p253 = scmp.le.s32.totalorder 1, %s12
    %p254 = scmp.lt.s32.totalorder %s12, 5
    %p255 = pnand %p253, %p254
    %p256 = pneg %p255
    // Predicated region
    $region41: #{non_local_forward.5} parent=5 // pred_check
      _
    $region42: #{non_local_forward.5} parent=5 // pred_check_branch
      %258 = sbr.rel (%p255) target = $region44
    $region43: #{non_local_forward.5} parent=5 // pred_region
      %s259 = ssub.s32 %s12, 1
      %p260 = scmp.lt.s32.totalorder %s21, 1
      %s261 = scalar_select %p260, %s21, 1
      %p262 = scmp.lt.s32.totalorder %s22, 1
      %s263 = scalar_select %p262, %s22, 1
      %s264 = smul.addr %s261, 2
      %s265 = sadd.s32 %s263, %s264
      %s266 = scalar_lea.vmem %s0, %s265
      %p267 = pneg %p52
      %p268 = pneg %p49
      %p269 = scmp.lt.s32.totalorder %s21, 1
      %s270 = scalar_select %p269, %s21, 1
      %p271 = scmp.lt.s32.totalorder %s22, 1
      %s272 = scalar_select %p271, %s22, 1
      %s273 = smul.addr %s270, 2
      %s274 = sadd.s32 %s272, %s273
      %s275 = smul.addr %s274, 4
      %s276 = scalar_lea.vmem %s1, %s275
      %p277 = pneg %p80
      %p278 = pneg %p77
      %p279 = scmp.lt.s32.totalorder %s21, 1
      %s280 = scalar_select %p279, %s21, 1
      %s281 = smul.addr %s280, 2
      %s282 = scalar_lea.vmem %s2, %s281
      %p283 = pneg %p106
      %p284 = pneg %p103
      %p285 = pneg %p127
      %p286 = pneg %p124
      %p287 = pneg %p148
      %p288 = pneg %p145
      %p289 = pneg %p169
      %p290 = pneg %p166
      %p291 = pneg %p197
      %p292 = pneg %p194
      %p293 = scmp.lt.s32.totalorder %s21, 1
      %s294 = scalar_select %p293, %s21, 1
      %p295 = scmp.lt.s32.totalorder %s22, 1
      %s296 = scalar_select %p295, %s22, 1
      %s297 = smul.addr %s294, 2
      %s298 = sadd.s32 %s296, %s297
      %s299 = smul.addr %s298, 4
      %s300 = scalar_lea.vmem %s6, %s299
      %p301 = scmp.lt.s32.totalorder %s21, 1
      %s302 = scalar_select %p301, %s21, 1
      %p303 = scmp.lt.s32.totalorder %s22, 1
      %s304 = scalar_select %p303, %s22, 1
      %s305 = smul.addr %s302, 2
      %s306 = sadd.s32 %s304, %s305
      %s307 = scalar_lea.vmem %s0, %s306
      %p308 = scmp.lt.s32.totalorder %s21, 1
      %s309 = scalar_select %p308, %s21, 1
      %p310 = scmp.lt.s32.totalorder %s22, 1
      %s311 = scalar_select %p310, %s22, 1
      %s312 = smul.addr %s309, 2
      %s313 = sadd.s32 %s311, %s312
      %s314 = smul.addr %s313, 4
      %s315 = scalar_lea.vmem %s1, %s314
      %p316 = scmp.lt.s32.totalorder %s21, 1
      %s317 = scalar_select %p316, %s21, 1
      %s318 = smul.addr %s317, 2
      %s319 = scalar_lea.vmem %s2, %s318
      %p320 = scmp.lt.s32.totalorder %s21, 1
      %s321 = scalar_select %p320, %s21, 1
      %p322 = scmp.lt.s32.totalorder %s22, 1
      %s323 = scalar_select %p322, %s22, 1
      %s324 = smul.addr %s321, 2
      %s325 = sadd.s32 %s323, %s324
      %s326 = smul.addr %s325, 4
      %s327 = scalar_lea.vmem %s6, %s326
      %v329 = vld [vmem:[%s307] sm:$0x1]
      %v330 = vld [vmem:[%s315] sm:$0xf]
      %v331 = vpack.c.bf16 %v330, %v330
      %v332 = vld [vmem:[%s319] sm:$0x3]
      %vm333 = vcmask 31744
      %v335 = vsel %vm333, %v332, 0
      %vm337 = vcmask 1041408
      %v339 = vsel %vm337, %v331, 0
      %341 = vmatprep.subr.bf16.mxu0 0
      %342 = vmatpush1.bf16.msra.mxu0 0
      %343 = vmatprep.subr.bf16.mxu0 0
      %344 = vmatpush1.bf16.msra.mxu0 0
      %345 = vmatprep.subr.bf16.mxu0 0
      %346 = vmatpush1.bf16.msra.mxu0 0
      %347 = vmatprep.subr.bf16.mxu0 0
      %348 = vmatpush1.bf16.msra.mxu0 0
      %349 = vmatprep.subr.bf16.mxu0 0
      %350 = vmatpush1.bf16.msra.mxu0 0
      %351 = vmatprep.subr.bf16.mxu0 0
      %352 = vmatpush1.bf16.msra.mxu0 0
      %353 = vmatprep.subr.bf16.mxu0 0
      %354 = vmatpush1.bf16.msra.mxu0 0
      %355 = vmatprep.subr.bf16.mxu0 0
      %356 = vmatpush1.bf16.msra.mxu0 %v339
      %357 = vmatprep.subr.bf16.mxu0 0
      %358 = vmatpush2.bf16.msra.mxu0 0
      %359 = vmatprep.subr.bf16.mxu0 0
      %360 = vmatpush2.bf16.msra.mxu0 0
      %361 = vmatprep.subr.bf16.mxu0 0
      %362 = vmatpush2.bf16.msra.mxu0 0
      %363 = vmatprep.subr.bf16.mxu0 0
      %364 = vmatpush2.bf16.msra.mxu0 0
      %365 = vmatprep.subr.bf16.mxu0 0
      %366 = vmatpush2.bf16.msra.mxu0 0
      %367 = vmatprep.subr.bf16.mxu0 0
      %368 = vmatpush2.bf16.msra.mxu0 0
      %369 = vmatprep.subr.bf16.mxu0 0
      %370 = vmatpush2.bf16.msra.mxu0 0
      %371 = vmatprep.subr.bf16.mxu0 0
      %372 = vmatpush2.bf16.msra.mxu0 0
      %373 = vmatprep.mubr.bf16.mxu0 0
      %374 = vmatmul.mubr.bf16.gmra.mxu0 %v335
      %v375 = vpop.f32.mrf.mxu0
      %v376 = vadd.f32 0.0, %v375
      %v377 = vpop.f32.mrf.mxu0
      %v378 = vpop.f32.mrf.mxu0
      %v379 = vpop.f32.mrf.mxu0
      %380 = vdwg.mxu0
      %v381 = vld [vmem:[%s4] sm:$0x3]
      %v382 = vpack.c.bf16 %v376, %v376
      %v384 = vsel %vm333, %v381, 0
      %v387 = vsel %vm337, %v382, 0
      %389 = vmatprep.subr.bf16.mxu0 0
      %390 = vmatpush1.bf16.msra.mxu0 0
      %391 = vmatprep.subr.bf16.mxu0 0
      %392 = vmatpush1.bf16.msra.mxu0 0
      %393 = vmatprep.subr.bf16.mxu0 0
      %394 = vmatpush1.bf16.msra.mxu0 0
      %395 = vmatprep.subr.bf16.mxu0 0
      %396 = vmatpush1.bf16.msra.mxu0 0
      %397 = vmatprep.subr.bf16.mxu0 0
      %398 = vmatpush1.bf16.msra.mxu0 0
      %399 = vmatprep.subr.bf16.mxu0 0
      %400 = vmatpush1.bf16.msra.mxu0 0
      %401 = vmatprep.subr.bf16.mxu0 0
      %402 = vmatpush1.bf16.msra.mxu0 0
      %403 = vmatprep.subr.bf16.mxu0 0
      %404 = vmatpush1.bf16.msra.mxu0 %v387
      %405 = vmatprep.subr.bf16.mxu0 0
      %406 = vmatpush2.bf16.msra.mxu0 0
      %407 = vmatprep.subr.bf16.mxu0 0
      %408 = vmatpush2.bf16.msra.mxu0 0
      %409 = vmatprep.subr.bf16.mxu0 0
      %410 = vmatpush2.bf16.msra.mxu0 0
      %411 = vmatprep.subr.bf16.mxu0 0
      %412 = vmatpush2.bf16.msra.mxu0 0
      %413 = vmatprep.subr.bf16.mxu0 0
      %414 = vmatpush2.bf16.msra.mxu0 0
      %415 = vmatprep.subr.bf16.mxu0 0
      %416 = vmatpush2.bf16.msra.mxu0 0
      %417 = vmatprep.subr.bf16.mxu0 0
      %418 = vmatpush2.bf16.msra.mxu0 0
      %419 = vmatprep.subr.bf16.mxu0 0
      %420 = vmatpush2.bf16.msra.mxu0 0
      %421 = vmatprep.mubr.bf16.mxu0 0
      %422 = vmatmul.mubr.bf16.gmra.mxu0 %v384
      %v423 = vpop.f32.mrf.mxu0
      %v424 = vadd.f32 0.0, %v423
      %v425 = vpop.f32.mrf.mxu0
      %v426 = vpop.f32.mrf.mxu0
      %v427 = vpop.f32.mrf.mxu0
      %428 = vdwg.mxu0
      %v429 = vld [vmem:[%s3] sm:$0x3]
      %vm430 = vcmask 15360
      %v432 = vsel %vm430, %v429, 0
      %vm434 = vcmask 1040384
      %v436 = vsel %vm434, %v329, 0
      %438 = vmatprep.subr.bf16.mxu0 0
      %439 = vmatpush1.bf16.msra.mxu0 0
      %440 = vmatprep.subr.bf16.mxu0 0
      %441 = vmatpush1.bf16.msra.mxu0 0
      %442 = vmatprep.subr.bf16.mxu0 0
      %443 = vmatpush1.bf16.msra.mxu0 0
      %444 = vmatprep.subr.bf16.mxu0 0
      %445 = vmatpush1.bf16.msra.mxu0 0
      %446 = vmatprep.subr.bf16.mxu0 0
      %447 = vmatpush1.bf16.msra.mxu0 0
      %448 = vmatprep.subr.bf16.mxu0 0
      %449 = vmatpush1.bf16.msra.mxu0 0
      %450 = vmatprep.subr.bf16.mxu0 0
      %451 = vmatpush1.bf16.msra.mxu0 0
      %452 = vmatprep.subr.bf16.mxu0 0
      %453 = vmatpush1.bf16.msra.mxu0 %v436
      %454 = vmatprep.subr.bf16.mxu0 0
      %455 = vmatpush2.bf16.msra.mxu0 0
      %456 = vmatprep.subr.bf16.mxu0 0
      %457 = vmatpush2.bf16.msra.mxu0 0
      %458 = vmatprep.subr.bf16.mxu0 0
      %459 = vmatpush2.bf16.msra.mxu0 0
      %460 = vmatprep.subr.bf16.mxu0 0
      %461 = vmatpush2.bf16.msra.mxu0 0
      %462 = vmatprep.subr.bf16.mxu0 0
      %463 = vmatpush2.bf16.msra.mxu0 0
      %464 = vmatprep.subr.bf16.mxu0 0
      %465 = vmatpush2.bf16.msra.mxu0 0
      %466 = vmatprep.subr.bf16.mxu0 0
      %467 = vmatpush2.bf16.msra.mxu0 0
      %468 = vmatprep.subr.bf16.mxu0 0
      %469 = vmatpush2.bf16.msra.mxu0 0
      %470 = vmatprep.mubr.bf16.mxu0 0
      %471 = vmatmul.mubr.bf16.gmra.mxu0 %v432
      %v472 = vpop.f32.mrf.mxu0
      %v473 = vadd.f32 %v424, %v472
      %v474 = vpop.f32.mrf.mxu0
      %v475 = vpop.f32.mrf.mxu0
      %v476 = vpop.f32.mrf.mxu0
      %477 = vdwg.mxu0
      %v478 = vmul.f32 %v330, 2.0
      %v479 = vadd.f32 %v473, %v478
      %v480 = vld [vmem:[%s5] sm:$0xf]
      %482 = vset.pattern.permute.xlu0 0
      %483 = vperm.xlu0 %482, %v480
      %v484 = vpop.permute.xlu0 %483
      %v486 = vadd.f32 %v479, %v484
      %487 = vst [vmem:[%s327] sm:$0xf] %v486
      %p488 = scmp.lt.s32.totalorder %s21, 1
      %s489 = scalar_select %p488, %s21, 1
      %p490 = scmp.lt.s32.totalorder %s22, 1
      %s491 = scalar_select %p490, %s22, 1
      %s492 = smul.addr %s489, 2
      %s493 = sadd.s32 %s491, %s492
      %s494 = smul.addr %s493, 4
      %s495 = scalar_lea.vmem %s6, %s494
      // Predicated region
      $region45: #{non_local_forward.5} parent=43 // pred_check
        %p496 = pneg %p194
      $region46: #{non_local_forward.5} parent=43 // pred_check_branch
        %498 = sbr.rel (%p496) target = $region48
      $region47: #{non_local_forward.5} parent=43 // pred_region
        _
      $region48: #{non_local_forward.5} parent=43 // pred_fallthru
        _
    $region44: #{non_local_forward.5} parent=5 // pred_fallthru
      _
    %p499 = scmp.le.s32.totalorder 2, %s12
    // Predicated region
    $region49: #{non_local_forward.5} parent=5 // pred_check
      %p500 = pneg %p499
    $region50: #{non_local_forward.5} parent=5 // pred_check_branch
      %502 = sbr.rel (%p500) target = $region52
    $region51: #{non_local_forward.5} parent=5 // pred_region
      %s503 = ssub.s32 %s12, 2
      // Predicated region
      $region53: #{non_local_forward.5} parent=51 // pred_check
        %p504 = pneg %p200
      $region54: #{non_local_forward.5} parent=51 // pred_check_branch
        %506 = sbr.rel (%p504) target = $region56
      $region55: #{non_local_forward.5} parent=51 // pred_region
        %p507 = scmp.lt.s32.totalorder %s23, 1
        %s508 = scalar_select %p507, %s23, 1
        %p509 = scmp.lt.s32.totalorder %s24, 1
        %s510 = scalar_select %p509, %s24, 1
        %s511 = smul.addr %s508, 2
        %s512 = sadd.s32 %s510, %s511
        %s513 = smul.addr %s512, 4
        %s514 = scalar_lea.vmem %s6, %s513
      $region56: #{non_local_forward.5} parent=51 // pred_fallthru
        _
    $region52: #{non_local_forward.5} parent=5 // pred_fallthru
      _
  $region6: #{non_local_forward.5} parent=0 // loop_footer
    %s16 = sadd.s32 1, %s12
  $region7: #{non_local_forward.5} parent=0 // loop_footer_branch
    %11 = sbr.rel target = $region3
  $region8: #{non_local_forward.5} parent=0 // loop_exit
    _

</llo_original>
